<compile_context>
chip_gen: v7x
topology: tpu7x:2x2x1
jax: 0.10.0
libtpu: 0.0.40
codegen_flags: <defaults>
</compile_context>

<pallas_src>
import functools
import math

import jax
import jax.numpy as jnp
from jax import lax
from jax.experimental import pallas as pl
from jax.experimental.pallas import tpu as pltpu


def _round_up(x, m):
    return (x + m - 1) // m * m


def _reorder_gates(w):
    """Reorder PyTorch's packed [i|f|g|o] gate blocks (axis 0) to [i|f|o|g]."""
    hd = w.shape[0] // 4
    return jnp.concatenate([w[:2 * hd], w[3 * hd:], w[2 * hd:3 * hd]], axis=0)


def _compute_last_idx(x_tokens, null_idx):
    """First t in [0, T-2] with x[t] != NULL and x[t+1] == NULL, else T-1."""
    _, t_len = x_tokens.shape
    cond = (x_tokens[:, :-1] != null_idx) & (x_tokens[:, 1:] == null_idx)
    has = jnp.any(cond, axis=1)
    first = jnp.argmax(cond, axis=1)
    return jnp.where(has, first, t_len - 1).astype(jnp.int32)


def _lstm_kernel(pregate_ref, idx_ref, whh0_ref, *refs,
                 num_layers, hidden, t_block):
    """One grid step = `t_block` consecutive time steps through all layers."""
    n_extra = 2 * (num_layers - 1)               # per layer >=1: w_cat, bias
    layer_refs = refs[:n_extra]
    out_ref = refs[n_extra]                      # (Np, H) gathered hidden
    h_ref = refs[n_extra + 1]                    # (L, Np, H) hidden state
    c_ref = refs[n_extra + 2]                    # (L, Np, H) cell state

    H = hidden
    tb = pl.program_id(0)

    @pl.when(tb == 0)
    def _():
        h_ref[...] = jnp.zeros_like(h_ref)
        c_ref[...] = jnp.zeros_like(c_ref)
        out_ref[...] = jnp.zeros_like(out_ref)

    # Resident operands, loaded once per grid step (hoisted out of time loop).
    whh0 = whh0_ref[...]                                         # (H, 4H) bf16
    idx = idx_ref[...]                                           # (Np, 1) i32
    wcats = [layer_refs[2 * l][...] for l in range(num_layers - 1)]
    biases = [layer_refs[2 * l + 1][...] for l in range(num_layers - 1)]

    def gate_nonlin(g, c_prev):
        # Packed gate order is [i | f | o | g]: one sigmoid slab, one tanh slab.
        sig = jax.nn.sigmoid(g[:, :3 * H])
        i_g = sig[:, 0 * H:1 * H]
        f_g = sig[:, 1 * H:2 * H]
        o_g = sig[:, 2 * H:3 * H]
        g_g = jnp.tanh(g[:, 3 * H:4 * H])
        c_new = f_g * c_prev + i_g * g_g
        h_new = o_g * jnp.tanh(c_new)
        return h_new, c_new

    # Fully-unrolled static inner time loop (amortizes grid-step overhead).
    for s in range(t_block):
        t = tb * t_block + s

        # ---- layer 0: input projection hoisted to the wrapper --------------
        g0 = pregate_ref[s] + jnp.dot(h_ref[0].astype(jnp.bfloat16), whh0,
                                      preferred_element_type=jnp.float32)
        h_new, c_new = gate_nonlin(g0, c_ref[0])
        h_ref[0] = h_new
        c_ref[0] = c_new
        inp = h_new

        # ---- layers >= 1: single fused concat(x, h) @ [W_ih ; W_hh] --------
        for l in range(1, num_layers):
            cat = jnp.concatenate([inp, h_ref[l]], axis=1).astype(jnp.bfloat16)
            g = (jnp.dot(cat, wcats[l - 1], preferred_element_type=jnp.float32)
                 + biases[l - 1])
            h_new, c_new = gate_nonlin(g, c_ref[l])
            h_ref[l] = h_new
            c_ref[l] = c_new
            inp = h_new
        # TODO(synk): inter-layer dropout (rnn_dropout > 0) not implemented;
        # the module default rnn_dropout=0 makes it a no-op.

        # In-kernel gather: keep hs[i, idx[i], :] of the top layer only.
        mask = jnp.broadcast_to(idx == t, inp.shape)             # (Np, H)
        out_ref[...] = jnp.where(mask, inp, out_ref[...])


def lstm_encoder_forward(x_tokens, params, *, null_idx, num_layers, t_block=8):
    emb_table = params["embed"]
    n, t_len = x_tokens.shape
    d = emb_table.shape[1]
    h = params["w_hh_0"].shape[1]

    # Pad batch to the f32 sublane (8) and time to a multiple of the block.
    n_pad = max(_round_up(n, 8), 8)
    t_pad = _round_up(t_len, t_block)

    # Data-dependent last-real-token index (vectorized; torch uses a host loop).
    idx = _compute_last_idx(x_tokens, null_idx)
    idx = jnp.pad(idx, (0, n_pad - n), constant_values=-1).reshape(n_pad, 1)

    # Embedding gather directly in time-major (T, N, D) order.
    emb = jnp.take(emb_table, jnp.transpose(x_tokens), axis=0)     # (T, N, D)
    emb = jnp.pad(emb, ((0, 0), (0, n_pad - n), (0, 0)))

    # Hoist the layer-0 input projection out of the recurrence: one large
    # (T*N, D) x (D, 4H) bf16 matmul (f32 accumulate), bias folded in,
    # gate columns repacked to [i|f|o|g].
    w_ih0 = jnp.transpose(_reorder_gates(params["w_ih_0"])).astype(jnp.bfloat16)
    b0 = _reorder_gates(params["b_ih_0"] + params["b_hh_0"]).astype(jnp.float32)
    pregate0 = jnp.dot(emb.astype(jnp.bfloat16).reshape(t_len * n_pad, d),
                       w_ih0, preferred_element_type=jnp.float32)
    pregate0 = pregate0.reshape(t_len, n_pad, 4 * h) + b0
    pregate0 = jnp.pad(pregate0, ((0, t_pad - t_len), (0, 0), (0, 0)))

    w_hh0 = jnp.transpose(_reorder_gates(params["w_hh_0"])).astype(jnp.bfloat16)

    args = [pregate0, idx, w_hh0]
    in_specs = [
        pl.BlockSpec((t_block, n_pad, 4 * h), lambda tb: (tb, 0, 0)),
        pl.BlockSpec((n_pad, 1), lambda tb: (0, 0)),
        pl.BlockSpec((h, 4 * h), lambda tb: (0, 0)),
    ]
    for l in range(1, num_layers):
        # Fused (D_in + H, 4H) gate matrix; bias b_ih + b_hh pre-combined.
        w_cat = jnp.concatenate(
            [jnp.transpose(_reorder_gates(params[f"w_ih_{l}"])),
             jnp.transpose(_reorder_gates(params[f"w_hh_{l}"]))],
            axis=0).astype(jnp.bfloat16)                           # (2H, 4H)
        b = _reorder_gates(params[f"b_ih_{l}"] + params[f"b_hh_{l}"]
                           ).reshape(1, 4 * h).astype(jnp.float32)
        args += [w_cat, b]
        in_specs += [pl.BlockSpec(w_cat.shape, lambda tb: (0, 0)),
                     pl.BlockSpec(b.shape, lambda tb: (0, 0))]
    # NOTE: at large H on v7x, add pipeline_mode=pl.Buffered(1) to the
    # constant-index weight specs to halve their VMEM residency; not needed at
    # these shapes.

    kernel = functools.partial(_lstm_kernel, num_layers=num_layers, hidden=h,
                               t_block=t_block)
    out = pl.pallas_call(
        kernel,
        out_shape=jax.ShapeDtypeStruct((n_pad, h), jnp.float32),
        grid_spec=pltpu.PrefetchScalarGridSpec(
            num_scalar_prefetch=0,
            grid=(t_pad // t_block,),
            in_specs=in_specs,
            out_specs=pl.BlockSpec((n_pad, h), lambda tb: (0, 0)),
            scratch_shapes=[pltpu.VMEM((num_layers, n_pad, h), jnp.float32),
                            pltpu.VMEM((num_layers, n_pad, h), jnp.float32)]),
        compiler_params=pltpu.CompilerParams(
            dimension_semantics=("arbitrary",)),   # recurrence: serial in time
    )(*args)
    return out[:n]


def init_params(key, vocab_size, wordvec_dim, rnn_dim, num_layers):
    """Same parameterization as nn.Embedding + nn.LSTM (PyTorch layout)."""
    keys = jax.random.split(key, 1 + 4 * num_layers)
    params = {"embed": jax.random.normal(keys[0], (vocab_size, wordvec_dim),
                                         jnp.float32)}
    s = 1.0 / math.sqrt(rnn_dim)
    k = 1
    for l in range(num_layers):
        in_dim = wordvec_dim if l == 0 else rnn_dim
        params[f"w_ih_{l}"] = jax.random.uniform(
            keys[k], (4 * rnn_dim, in_dim), jnp.float32, -s, s); k += 1
        params[f"w_hh_{l}"] = jax.random.uniform(
            keys[k], (4 * rnn_dim, rnn_dim), jnp.float32, -s, s); k += 1
        params[f"b_ih_{l}"] = jax.random.uniform(
            keys[k], (4 * rnn_dim,), jnp.float32, -s, s); k += 1
        params[f"b_hh_{l}"] = jax.random.uniform(
            keys[k], (4 * rnn_dim,), jnp.float32, -s, s); k += 1
    return params


def reference_forward(x_tokens, params, *, null_idx, num_layers):
    """Pure-JAX f32 reference of the PyTorch LstmEncoder.forward."""
    emb = jnp.take(params["embed"], x_tokens, axis=0).astype(jnp.float32)
    n = emb.shape[0]
    layer_in = jnp.transpose(emb, (1, 0, 2))                  # (T, N, D)
    for l in range(num_layers):
        w_ih = params[f"w_ih_{l}"].astype(jnp.float32)        # (4H, D_in)
        w_hh = params[f"w_hh_{l}"].astype(jnp.float32)        # (4H, H)
        b = (params[f"b_ih_{l}"] + params[f"b_hh_{l}"]).astype(jnp.float32)
        hdim = w_hh.shape[1]

        def step(carry, x_t, w_ih=w_ih, w_hh=w_hh, b=b, hdim=hdim):
            h_prev, c_prev = carry
            gates = x_t @ w_ih.T + h_prev @ w_hh.T + b
            i_g = jax.nn.sigmoid(gates[:, 0 * hdim:1 * hdim])
            f_g = jax.nn.sigmoid(gates[:, 1 * hdim:2 * hdim])
            g_g = jnp.tanh(gates[:, 2 * hdim:3 * hdim])
            o_g = jax.nn.sigmoid(gates[:, 3 * hdim:4 * hdim])
            c_new = f_g * c_prev + i_g * g_g
            h_new = o_g * jnp.tanh(c_new)
            return (h_new, c_new), h_new

        init = (jnp.zeros((n, hdim), jnp.float32),
                jnp.zeros((n, hdim), jnp.float32))
        _, hs = lax.scan(step, init, layer_in)
        layer_in = hs                                         # (T, N, H)

    idx = _compute_last_idx(x_tokens, null_idx)
    hs_nth = jnp.transpose(layer_in, (1, 0, 2))               # (N, T, H)
    return hs_nth[jnp.arange(n), idx, :]


if __name__ == "__main__":
    token_to_idx = {"<NULL>": 0, "<START>": 1, "<END>": 2,
                    "red": 3, "blue": 4, "cube": 5, "sphere": 6, "left": 7}
    NULL = token_to_idx["<NULL>"]
    N, T = 2, 8
    WORDVEC_DIM, RNN_DIM, NUM_LAYERS = 32, 32, 2

    key = jax.random.PRNGKey(0)
    params = init_params(key, len(token_to_idx), WORDVEC_DIM, RNN_DIM,
                         NUM_LAYERS)

    # Deterministic token sequences (START ... END, NULL-padded).
    x = jnp.array([[1, 5, 6, 7, 2, 0, 0, 0],
                   [1, 4, 3, 5, 6, 7, 2, 0]], dtype=jnp.int32)

    fwd = jax.jit(functools.partial(lstm_encoder_forward,
                                    null_idx=NULL, num_layers=NUM_LAYERS))
    y = jax.block_until_ready(fwd(x, params))

    y_ref = reference_forward(x, params, null_idx=NULL, num_layers=NUM_LAYERS)
    assert y.shape == (N, RNN_DIM)
    # bf16 matmul operands (f32 accumulate / f32 state) -> relaxed tolerance.
    max_err = float(jnp.max(jnp.abs(y - y_ref)))
    assert max_err < 5e-2, max_err
    print("KERNEL_OK")
</pallas_src>

<mosaic_0001>
module attributes {stable_mosaic.version = 11 : i64} {
  func.func @_lstm_kernel(%arg0: i32, %arg1: memref<8x8x128xf32, #tpu.memory_space<vmem>>, %arg2: memref<8x1xi32, #tpu.memory_space<vmem>>, %arg3: memref<32x128xbf16, #tpu.memory_space<vmem>>, %arg4: memref<64x128xbf16, #tpu.memory_space<vmem>>, %arg5: memref<1x128xf32, #tpu.memory_space<vmem>>, %arg6: memref<8x32xf32, #tpu.memory_space<vmem>>, %arg7: memref<2x8x32xf32, #tpu.memory_space<vmem>>, %arg8: memref<2x8x32xf32, #tpu.memory_space<vmem>>) attributes {dimension_semantics = [#tpu.dimension_semantics<arbitrary>], iteration_bounds = array<i64: 1>, scalar_prefetch = 0 : i64, scratch_operands = 2 : i64, tpu.core_type = #tpu.core_type<tc>, window_params = [{transform_indices = @transform_0, window_bounds = array<i64: 8, 8, 128>}, {pipeline_mode = #tpu.pipeline_mode<synchronous>, transform_indices = @transform_1, window_bounds = array<i64: 8, 1>}, {pipeline_mode = #tpu.pipeline_mode<synchronous>, transform_indices = @transform_2, window_bounds = array<i64: 32, 128>}, {pipeline_mode = #tpu.pipeline_mode<synchronous>, transform_indices = @transform_3, window_bounds = array<i64: 64, 128>}, {pipeline_mode = #tpu.pipeline_mode<synchronous>, transform_indices = @transform_4, window_bounds = array<i64: 1, 128>}, {pipeline_mode = #tpu.pipeline_mode<synchronous>, transform_indices = @transform_5, window_bounds = array<i64: 8, 32>}]} {
    %c0_i32 = arith.constant 0 : i32
    %0 = arith.cmpi eq, %arg0, %c0_i32 : i32
    %1 = arith.extui %0 : i1 to i32
    %c0_i32_0 = arith.constant 0 : i32
    %2 = arith.cmpi ne, %1, %c0_i32_0 : i32
    scf.if %2 {
      %cst_288 = arith.constant 0.000000e+00 : f32
      %575 = vector.broadcast %cst_288 : f32 to vector<2x8x32xf32>
      %c0_289 = arith.constant 0 : index
      %c0_290 = arith.constant 0 : index
      %c0_291 = arith.constant 0 : index
      %576 = vector.load %arg7[%c0_289, %c0_290, %c0_291] : memref<2x8x32xf32, #tpu.memory_space<vmem>>, vector<2x8x32xf32>
      tpu.vector_store %arg7[%c0_289, %c0_290, %c0_291], %575 {strides = array<i32>} : memref<2x8x32xf32, #tpu.memory_space<vmem>>, vector<2x8x32xf32>,
      %cst_292 = arith.constant 0.000000e+00 : f32
      %577 = vector.broadcast %cst_292 : f32 to vector<2x8x32xf32>
      %c0_293 = arith.constant 0 : index
      %c0_294 = arith.constant 0 : index
      %c0_295 = arith.constant 0 : index
      %578 = vector.load %arg8[%c0_293, %c0_294, %c0_295] : memref<2x8x32xf32, #tpu.memory_space<vmem>>, vector<2x8x32xf32>
      tpu.vector_store %arg8[%c0_293, %c0_294, %c0_295], %577 {strides = array<i32>} : memref<2x8x32xf32, #tpu.memory_space<vmem>>, vector<2x8x32xf32>,
      %cst_296 = arith.constant 0.000000e+00 : f32
      %579 = vector.broadcast %cst_296 : f32 to vector<8x32xf32>
      %c0_297 = arith.constant 0 : index
      %c0_298 = arith.constant 0 : index
      %580 = vector.load %arg6[%c0_297, %c0_298] : memref<8x32xf32, #tpu.memory_space<vmem>>, vector<8x32xf32>
      tpu.vector_store %arg6[%c0_297, %c0_298], %579 {strides = array<i32>} : memref<8x32xf32, #tpu.memory_space<vmem>>, vector<8x32xf32>,
    } else {
    }
    %c0 = arith.constant 0 : index
    %c0_1 = arith.constant 0 : index
    %3 = vector.load %arg3[%c0, %c0_1] : memref<32x128xbf16, #tpu.memory_space<vmem>>, vector<32x128xbf16>
    %c0_2 = arith.constant 0 : index
    %c0_3 = arith.constant 0 : index
    %4 = vector.load %arg2[%c0_2, %c0_3] : memref<8x1xi32, #tpu.memory_space<vmem>>, vector<8x1xi32>
    %c0_4 = arith.constant 0 : index
    %c0_5 = arith.constant 0 : index
    %5 = vector.load %arg4[%c0_4, %c0_5] : memref<64x128xbf16, #tpu.memory_space<vmem>>, vector<64x128xbf16>
    %c0_6 = arith.constant 0 : index
    %c0_7 = arith.constant 0 : index
    %6 = vector.load %arg5[%c0_6, %c0_7] : memref<1x128xf32, #tpu.memory_space<vmem>>, vector<1x128xf32>
    %c8_i32 = arith.constant 8 : i32
    %7 = arith.muli %arg0, %c8_i32 : i32
    %c0_i32_8 = arith.constant 0 : i32
    %8 = arith.addi %7, %c0_i32_8 : i32
    %c0_9 = arith.constant 0 : index
    %c0_10 = arith.constant 0 : index
    %c0_11 = arith.constant 0 : index
    %9 = vector.load %arg1[%c0_9, %c0_10, %c0_11] : memref<8x8x128xf32, #tpu.memory_space<vmem>>, vector<1x8x128xf32>
    %10 = vector.shape_cast %9 : vector<1x8x128xf32> to vector<8x128xf32>
    %c0_12 = arith.constant 0 : index
    %c0_13 = arith.constant 0 : index
    %c0_14 = arith.constant 0 : index
    %11 = vector.load %arg7[%c0_12, %c0_13, %c0_14] : memref<2x8x32xf32, #tpu.memory_space<vmem>>, vector<1x8x32xf32>
    %12 = vector.shape_cast %11 : vector<1x8x32xf32> to vector<8x32xf32>
    %13 = arith.truncf %12 : vector<8x32xf32> to vector<8x32xbf16>
    %cst = arith.constant dense<0.000000e+00> : vector<8x128xf32>
    %14 = tpu.matmul %13, %3, %cst {dimension_numbers = #tpu.dot_dimension_numbers<[1], [0], [0], [1], [0, 0, 1, 1], [], []>} : vector<8x32xbf16>, vector<32x128xbf16>, vector<8x128xf32> -> vector<8x128xf32>
    %15 = arith.addf %10, %14 : vector<8x128xf32>
    %c0_15 = arith.constant 0 : index
    %c0_16 = arith.constant 0 : index
    %c0_17 = arith.constant 0 : index
    %16 = vector.load %arg8[%c0_15, %c0_16, %c0_17] : memref<2x8x32xf32, #tpu.memory_space<vmem>>, vector<1x8x32xf32>
    %17 = vector.shape_cast %16 : vector<1x8x32xf32> to vector<8x32xf32>
    %18 = vector.extract_strided_slice %15 {offsets = [0, 0], sizes = [8, 96], strides = [1, 1]} : vector<8x128xf32> to vector<8x96xf32>
    %19 = arith.negf %18 : vector<8x96xf32>
    %20 = math.exp %19 : vector<8x96xf32>
    %cst_18 = arith.constant 1.000000e+00 : f32
    %21 = vector.broadcast %cst_18 : f32 to vector<8x96xf32>
    %22 = arith.addf %21, %20 : vector<8x96xf32>
    %23 = arith.divf %21, %22 : vector<8x96xf32>
    %24 = vector.extract_strided_slice %23 {offsets = [0, 0], sizes = [8, 32], strides = [1, 1]} : vector<8x96xf32> to vector<8x32xf32>
    %25 = vector.extract_strided_slice %23 {offsets = [0, 32], sizes = [8, 32], strides = [1, 1]} : vector<8x96xf32> to vector<8x32xf32>
    %26 = vector.extract_strided_slice %23 {offsets = [0, 64], sizes = [8, 32], strides = [1, 1]} : vector<8x96xf32> to vector<8x32xf32>
    %27 = vector.extract_strided_slice %15 {offsets = [0, 96], sizes = [8, 32], strides = [1, 1]} : vector<8x128xf32> to vector<8x32xf32>
    %28 = math.tanh %27 : vector<8x32xf32>
    %29 = arith.mulf %25, %17 : vector<8x32xf32>
    %30 = arith.mulf %24, %28 : vector<8x32xf32>
    %31 = arith.addf %29, %30 : vector<8x32xf32>
    %32 = math.tanh %31 : vector<8x32xf32>
    %33 = arith.mulf %26, %32 : vector<8x32xf32>
    %c0_19 = arith.constant 0 : index
    %c0_20 = arith.constant 0 : index
    %c0_21 = arith.constant 0 : index
    %34 = vector.load %arg7[%c0_19, %c0_20, %c0_21] : memref<2x8x32xf32, #tpu.memory_space<vmem>>, vector<1x8x32xf32>
    %35 = vector.shape_cast %34 : vector<1x8x32xf32> to vector<8x32xf32>
    %36 = vector.shape_cast %33 : vector<8x32xf32> to vector<1x8x32xf32>
    tpu.vector_store %arg7[%c0_19, %c0_20, %c0_21], %36 {strides = array<i32>} : memref<2x8x32xf32, #tpu.memory_space<vmem>>, vector<1x8x32xf32>,
    %c0_22 = arith.constant 0 : index
    %c0_23 = arith.constant 0 : index
    %c0_24 = arith.constant 0 : index
    %37 = vector.load %arg8[%c0_22, %c0_23, %c0_24] : memref<2x8x32xf32, #tpu.memory_space<vmem>>, vector<1x8x32xf32>
    %38 = vector.shape_cast %37 : vector<1x8x32xf32> to vector<8x32xf32>
    %39 = vector.shape_cast %31 : vector<8x32xf32> to vector<1x8x32xf32>
    tpu.vector_store %arg8[%c0_22, %c0_23, %c0_24], %39 {strides = array<i32>} : memref<2x8x32xf32, #tpu.memory_space<vmem>>, vector<1x8x32xf32>,
    %c1 = arith.constant 1 : index
    %c0_25 = arith.constant 0 : index
    %c0_26 = arith.constant 0 : index
    %40 = vector.load %arg7[%c1, %c0_25, %c0_26] : memref<2x8x32xf32, #tpu.memory_space<vmem>>, vector<1x8x32xf32>
    %41 = vector.shape_cast %40 : vector<1x8x32xf32> to vector<8x32xf32>
    %42 = tpu.concatenate %33, %41 in 1 : vector<8x32xf32>, vector<8x32xf32> -> vector<8x64xf32>
    %43 = arith.truncf %42 : vector<8x64xf32> to vector<8x64xbf16>
    %cst_27 = arith.constant dense<0.000000e+00> : vector<8x128xf32>
    %44 = tpu.matmul %43, %5, %cst_27 {dimension_numbers = #tpu.dot_dimension_numbers<[1], [0], [0], [1], [0, 0, 1, 1], [], []>} : vector<8x64xbf16>, vector<64x128xbf16>, vector<8x128xf32> -> vector<8x128xf32>
    %45 = vector.broadcast %6 : vector<1x128xf32> to vector<8x128xf32>
    %46 = arith.addf %44, %45 : vector<8x128xf32>
    %c1_28 = arith.constant 1 : index
    %c0_29 = arith.constant 0 : index
    %c0_30 = arith.constant 0 : index
    %47 = vector.load %arg8[%c1_28, %c0_29, %c0_30] : memref<2x8x32xf32, #tpu.memory_space<vmem>>, vector<1x8x32xf32>
    %48 = vector.shape_cast %47 : vector<1x8x32xf32> to vector<8x32xf32>
    %49 = vector.extract_strided_slice %46 {offsets = [0, 0], sizes = [8, 96], strides = [1, 1]} : vector<8x128xf32> to vector<8x96xf32>
    %50 = arith.negf %49 : vector<8x96xf32>
    %51 = math.exp %50 : vector<8x96xf32>
    %cst_31 = arith.constant 1.000000e+00 : f32
    %52 = vector.broadcast %cst_31 : f32 to vector<8x96xf32>
    %53 = arith.addf %52, %51 : vector<8x96xf32>
    %54 = arith.divf %52, %53 : vector<8x96xf32>
    %55 = vector.extract_strided_slice %54 {offsets = [0, 0], sizes = [8, 32], strides = [1, 1]} : vector<8x96xf32> to vector<8x32xf32>
    %56 = vector.extract_strided_slice %54 {offsets = [0, 32], sizes = [8, 32], strides = [1, 1]} : vector<8x96xf32> to vector<8x32xf32>
    %57 = vector.extract_strided_slice %54 {offsets = [0, 64], sizes = [8, 32], strides = [1, 1]} : vector<8x96xf32> to vector<8x32xf32>
    %58 = vector.extract_strided_slice %46 {offsets = [0, 96], sizes = [8, 32], strides = [1, 1]} : vector<8x128xf32> to vector<8x32xf32>
    %59 = math.tanh %58 : vector<8x32xf32>
    %60 = arith.mulf %56, %48 : vector<8x32xf32>
    %61 = arith.mulf %55, %59 : vector<8x32xf32>
    %62 = arith.addf %60, %61 : vector<8x32xf32>
    %63 = math.tanh %62 : vector<8x32xf32>
    %64 = arith.mulf %57, %63 : vector<8x32xf32>
    %c1_32 = arith.constant 1 : index
    %c0_33 = arith.constant 0 : index
    %c0_34 = arith.constant 0 : index
    %65 = vector.load %arg7[%c1_32, %c0_33, %c0_34] : memref<2x8x32xf32, #tpu.memory_space<vmem>>, vector<1x8x32xf32>
    %66 = vector.shape_cast %65 : vector<1x8x32xf32> to vector<8x32xf32>
    %67 = vector.shape_cast %64 : vector<8x32xf32> to vector<1x8x32xf32>
    tpu.vector_store %arg7[%c1_32, %c0_33, %c0_34], %67 {strides = array<i32>} : memref<2x8x32xf32, #tpu.memory_space<vmem>>, vector<1x8x32xf32>,
    %c1_35 = arith.constant 1 : index
    %c0_36 = arith.constant 0 : index
    %c0_37 = arith.constant 0 : index
    %68 = vector.load %arg8[%c1_35, %c0_36, %c0_37] : memref<2x8x32xf32, #tpu.memory_space<vmem>>, vector<1x8x32xf32>
    %69 = vector.shape_cast %68 : vector<1x8x32xf32> to vector<8x32xf32>
    %70 = vector.shape_cast %62 : vector<8x32xf32> to vector<1x8x32xf32>
    tpu.vector_store %arg8[%c1_35, %c0_36, %c0_37], %70 {strides = array<i32>} : memref<2x8x32xf32, #tpu.memory_space<vmem>>, vector<1x8x32xf32>,
    %71 = vector.broadcast %8 : i32 to vector<8x1xi32>
    %72 = arith.cmpi eq, %4, %71 : vector<8x1xi32>
    %73 = vector.shape_cast %72 : vector<8x1xi1> to vector<8x1xi1>
    %74 = vector.broadcast %73 : vector<8x1xi1> to vector<8x32xi1>
    %c0_38 = arith.constant 0 : index
    %c0_39 = arith.constant 0 : index
    %75 = vector.load %arg6[%c0_38, %c0_39] : memref<8x32xf32, #tpu.memory_space<vmem>>, vector<8x32xf32>
    %76 = arith.select %74, %64, %75 : vector<8x32xi1>, vector<8x32xf32>
    %c0_40 = arith.constant 0 : index
    %c0_41 = arith.constant 0 : index
    %77 = vector.load %arg6[%c0_40, %c0_41] : memref<8x32xf32, #tpu.memory_space<vmem>>, vector<8x32xf32>
    tpu.vector_store %arg6[%c0_40, %c0_41], %76 {strides = array<i32>} : memref<8x32xf32, #tpu.memory_space<vmem>>, vector<8x32xf32>,
    %c8_i32_42 = arith.constant 8 : i32
    %78 = arith.muli %arg0, %c8_i32_42 : i32
    %c1_i32 = arith.constant 1 : i32
    %79 = arith.addi %78, %c1_i32 : i32
    %c1_43 = arith.constant 1 : index
    %c0_44 = arith.constant 0 : index
    %c0_45 = arith.constant 0 : index
    %80 = vector.load %arg1[%c1_43, %c0_44, %c0_45] : memref<8x8x128xf32, #tpu.memory_space<vmem>>, vector<1x8x128xf32>
    %81 = vector.shape_cast %80 : vector<1x8x128xf32> to vector<8x128xf32>
    %c0_46 = arith.constant 0 : index
    %c0_47 = arith.constant 0 : index
    %c0_48 = arith.constant 0 : index
    %82 = vector.load %arg7[%c0_46, %c0_47, %c0_48] : memref<2x8x32xf32, #tpu.memory_space<vmem>>, vector<1x8x32xf32>
    %83 = vector.shape_cast %82 : vector<1x8x32xf32> to vector<8x32xf32>
    %84 = arith.truncf %83 : vector<8x32xf32> to vector<8x32xbf16>
    %cst_49 = arith.constant dense<0.000000e+00> : vector<8x128xf32>
    %85 = tpu.matmul %84, %3, %cst_49 {dimension_numbers = #tpu.dot_dimension_numbers<[1], [0], [0], [1], [0, 0, 1, 1], [], []>} : vector<8x32xbf16>, vector<32x128xbf16>, vector<8x128xf32> -> vector<8x128xf32>
    %86 = arith.addf %81, %85 : vector<8x128xf32>
    %c0_50 = arith.constant 0 : index
    %c0_51 = arith.constant 0 : index
    %c0_52 = arith.constant 0 : index
    %87 = vector.load %arg8[%c0_50, %c0_51, %c0_52] : memref<2x8x32xf32, #tpu.memory_space<vmem>>, vector<1x8x32xf32>
    %88 = vector.shape_cast %87 : vector<1x8x32xf32> to vector<8x32xf32>
    %89 = vector.extract_strided_slice %86 {offsets = [0, 0], sizes = [8, 96], strides = [1, 1]} : vector<8x128xf32> to vector<8x96xf32>
    %90 = arith.negf %89 : vector<8x96xf32>
    %91 = math.exp %90 : vector<8x96xf32>
    %cst_53 = arith.constant 1.000000e+00 : f32
    %92 = vector.broadcast %cst_53 : f32 to vector<8x96xf32>
    %93 = arith.addf %92, %91 : vector<8x96xf32>
    %94 = arith.divf %92, %93 : vector<8x96xf32>
    %95 = vector.extract_strided_slice %94 {offsets = [0, 0], sizes = [8, 32], strides = [1, 1]} : vector<8x96xf32> to vector<8x32xf32>
    %96 = vector.extract_strided_slice %94 {offsets = [0, 32], sizes = [8, 32], strides = [1, 1]} : vector<8x96xf32> to vector<8x32xf32>
    %97 = vector.extract_strided_slice %94 {offsets = [0, 64], sizes = [8, 32], strides = [1, 1]} : vector<8x96xf32> to vector<8x32xf32>
    %98 = vector.extract_strided_slice %86 {offsets = [0, 96], sizes = [8, 32], strides = [1, 1]} : vector<8x128xf32> to vector<8x32xf32>
    %99 = math.tanh %98 : vector<8x32xf32>
    %100 = arith.mulf %96, %88 : vector<8x32xf32>
    %101 = arith.mulf %95, %99 : vector<8x32xf32>
    %102 = arith.addf %100, %101 : vector<8x32xf32>
    %103 = math.tanh %102 : vector<8x32xf32>
    %104 = arith.mulf %97, %103 : vector<8x32xf32>
    %c0_54 = arith.constant 0 : index
    %c0_55 = arith.constant 0 : index
    %c0_56 = arith.constant 0 : index
    %105 = vector.load %arg7[%c0_54, %c0_55, %c0_56] : memref<2x8x32xf32, #tpu.memory_space<vmem>>, vector<1x8x32xf32>
    %106 = vector.shape_cast %105 : vector<1x8x32xf32> to vector<8x32xf32>
    %107 = vector.shape_cast %104 : vector<8x32xf32> to vector<1x8x32xf32>
    tpu.vector_store %arg7[%c0_54, %c0_55, %c0_56], %107 {strides = array<i32>} : memref<2x8x32xf32, #tpu.memory_space<vmem>>, vector<1x8x32xf32>,
    %c0_57 = arith.constant 0 : index
    %c0_58 = arith.constant 0 : index
    %c0_59 = arith.constant 0 : index
    %108 = vector.load %arg8[%c0_57, %c0_58, %c0_59] : memref<2x8x32xf32, #tpu.memory_space<vmem>>, vector<1x8x32xf32>
    %109 = vector.shape_cast %108 : vector<1x8x32xf32> to vector<8x32xf32>
    %110 = vector.shape_cast %102 : vector<8x32xf32> to vector<1x8x32xf32>
    tpu.vector_store %arg8[%c0_57, %c0_58, %c0_59], %110 {strides = array<i32>} : memref<2x8x32xf32, #tpu.memory_space<vmem>>, vector<1x8x32xf32>,
    %c1_60 = arith.constant 1 : index
    %c0_61 = arith.constant 0 : index
    %c0_62 = arith.constant 0 : index
    %111 = vector.load %arg7[%c1_60, %c0_61, %c0_62] : memref<2x8x32xf32, #tpu.memory_space<vmem>>, vector<1x8x32xf32>
    %112 = vector.shape_cast %111 : vector<1x8x32xf32> to vector<8x32xf32>
    %113 = tpu.concatenate %104, %112 in 1 : vector<8x32xf32>, vector<8x32xf32> -> vector<8x64xf32>
    %114 = arith.truncf %113 : vector<8x64xf32> to vector<8x64xbf16>
    %cst_63 = arith.constant dense<0.000000e+00> : vector<8x128xf32>
    %115 = tpu.matmul %114, %5, %cst_63 {dimension_numbers = #tpu.dot_dimension_numbers<[1], [0], [0], [1], [0, 0, 1, 1], [], []>} : vector<8x64xbf16>, vector<64x128xbf16>, vector<8x128xf32> -> vector<8x128xf32>
    %116 = vector.broadcast %6 : vector<1x128xf32> to vector<8x128xf32>
    %117 = arith.addf %115, %116 : vector<8x128xf32>
    %c1_64 = arith.constant 1 : index
    %c0_65 = arith.constant 0 : index
    %c0_66 = arith.constant 0 : index
    %118 = vector.load %arg8[%c1_64, %c0_65, %c0_66] : memref<2x8x32xf32, #tpu.memory_space<vmem>>, vector<1x8x32xf32>
    %119 = vector.shape_cast %118 : vector<1x8x32xf32> to vector<8x32xf32>
    %120 = vector.extract_strided_slice %117 {offsets = [0, 0], sizes = [8, 96], strides = [1, 1]} : vector<8x128xf32> to vector<8x96xf32>
    %121 = arith.negf %120 : vector<8x96xf32>
    %122 = math.exp %121 : vector<8x96xf32>
    %cst_67 = arith.constant 1.000000e+00 : f32
    %123 = vector.broadcast %cst_67 : f32 to vector<8x96xf32>
    %124 = arith.addf %123, %122 : vector<8x96xf32>
    %125 = arith.divf %123, %124 : vector<8x96xf32>
    %126 = vector.extract_strided_slice %125 {offsets = [0, 0], sizes = [8, 32], strides = [1, 1]} : vector<8x96xf32> to vector<8x32xf32>
    %127 = vector.extract_strided_slice %125 {offsets = [0, 32], sizes = [8, 32], strides = [1, 1]} : vector<8x96xf32> to vector<8x32xf32>
    %128 = vector.extract_strided_slice %125 {offsets = [0, 64], sizes = [8, 32], strides = [1, 1]} : vector<8x96xf32> to vector<8x32xf32>
    %129 = vector.extract_strided_slice %117 {offsets = [0, 96], sizes = [8, 32], strides = [1, 1]} : vector<8x128xf32> to vector<8x32xf32>
    %130 = math.tanh %129 : vector<8x32xf32>
    %131 = arith.mulf %127, %119 : vector<8x32xf32>
    %132 = arith.mulf %126, %130 : vector<8x32xf32>
    %133 = arith.addf %131, %132 : vector<8x32xf32>
    %134 = math.tanh %133 : vector<8x32xf32>
    %135 = arith.mulf %128, %134 : vector<8x32xf32>
    %c1_68 = arith.constant 1 : index
    %c0_69 = arith.constant 0 : index
    %c0_70 = arith.constant 0 : index
    %136 = vector.load %arg7[%c1_68, %c0_69, %c0_70] : memref<2x8x32xf32, #tpu.memory_space<vmem>>, vector<1x8x32xf32>
    %137 = vector.shape_cast %136 : vector<1x8x32xf32> to vector<8x32xf32>
    %138 = vector.shape_cast %135 : vector<8x32xf32> to vector<1x8x32xf32>
    tpu.vector_store %arg7[%c1_68, %c0_69, %c0_70], %138 {strides = array<i32>} : memref<2x8x32xf32, #tpu.memory_space<vmem>>, vector<1x8x32xf32>,
    %c1_71 = arith.constant 1 : index
    %c0_72 = arith.constant 0 : index
    %c0_73 = arith.constant 0 : index
    %139 = vector.load %arg8[%c1_71, %c0_72, %c0_73] : memref<2x8x32xf32, #tpu.memory_space<vmem>>, vector<1x8x32xf32>
    %140 = vector.shape_cast %139 : vector<1x8x32xf32> to vector<8x32xf32>
    %141 = vector.shape_cast %133 : vector<8x32xf32> to vector<1x8x32xf32>
    tpu.vector_store %arg8[%c1_71, %c0_72, %c0_73], %141 {strides = array<i32>} : memref<2x8x32xf32, #tpu.memory_space<vmem>>, vector<1x8x32xf32>,
    %142 = vector.broadcast %79 : i32 to vector<8x1xi32>
    %143 = arith.cmpi eq, %4, %142 : vector<8x1xi32>
    %144 = vector.shape_cast %143 : vector<8x1xi1> to vector<8x1xi1>
    %145 = vector.broadcast %144 : vector<8x1xi1> to vector<8x32xi1>
    %c0_74 = arith.constant 0 : index
    %c0_75 = arith.constant 0 : index
    %146 = vector.load %arg6[%c0_74, %c0_75] : memref<8x32xf32, #tpu.memory_space<vmem>>, vector<8x32xf32>
    %147 = arith.select %145, %135, %146 : vector<8x32xi1>, vector<8x32xf32>
    %c0_76 = arith.constant 0 : index
    %c0_77 = arith.constant 0 : index
    %148 = vector.load %arg6[%c0_76, %c0_77] : memref<8x32xf32, #tpu.memory_space<vmem>>, vector<8x32xf32>
    tpu.vector_store %arg6[%c0_76, %c0_77], %147 {strides = array<i32>} : memref<8x32xf32, #tpu.memory_space<vmem>>, vector<8x32xf32>,
    %c8_i32_78 = arith.constant 8 : i32
    %149 = arith.muli %arg0, %c8_i32_78 : i32
    %c2_i32 = arith.constant 2 : i32
    %150 = arith.addi %149, %c2_i32 : i32
    %c2 = arith.constant 2 : index
    %c0_79 = arith.constant 0 : index
    %c0_80 = arith.constant 0 : index
    %151 = vector.load %arg1[%c2, %c0_79, %c0_80] : memref<8x8x128xf32, #tpu.memory_space<vmem>>, vector<1x8x128xf32>
    %152 = vector.shape_cast %151 : vector<1x8x128xf32> to vector<8x128xf32>
    %c0_81 = arith.constant 0 : index
    %c0_82 = arith.constant 0 : index
    %c0_83 = arith.constant 0 : index
    %153 = vector.load %arg7[%c0_81, %c0_82, %c0_83] : memref<2x8x32xf32, #tpu.memory_space<vmem>>, vector<1x8x32xf32>
    %154 = vector.shape_cast %153 : vector<1x8x32xf32> to vector<8x32xf32>
    %155 = arith.truncf %154 : vector<8x32xf32> to vector<8x32xbf16>
    %cst_84 = arith.constant dense<0.000000e+00> : vector<8x128xf32>
    %156 = tpu.matmul %155, %3, %cst_84 {dimension_numbers = #tpu.dot_dimension_numbers<[1], [0], [0], [1], [0, 0, 1, 1], [], []>} : vector<8x32xbf16>, vector<32x128xbf16>, vector<8x128xf32> -> vector<8x128xf32>
    %157 = arith.addf %152, %156 : vector<8x128xf32>
    %c0_85 = arith.constant 0 : index
    %c0_86 = arith.constant 0 : index
    %c0_87 = arith.constant 0 : index
    %158 = vector.load %arg8[%c0_85, %c0_86, %c0_87] : memref<2x8x32xf32, #tpu.memory_space<vmem>>, vector<1x8x32xf32>
    %159 = vector.shape_cast %158 : vector<1x8x32xf32> to vector<8x32xf32>
    %160 = vector.extract_strided_slice %157 {offsets = [0, 0], sizes = [8, 96], strides = [1, 1]} : vector<8x128xf32> to vector<8x96xf32>
    %161 = arith.negf %160 : vector<8x96xf32>
    %162 = math.exp %161 : vector<8x96xf32>
    %cst_88 = arith.constant 1.000000e+00 : f32
    %163 = vector.broadcast %cst_88 : f32 to vector<8x96xf32>
    %164 = arith.addf %163, %162 : vector<8x96xf32>
    %165 = arith.divf %163, %164 : vector<8x96xf32>
    %166 = vector.extract_strided_slice %165 {offsets = [0, 0], sizes = [8, 32], strides = [1, 1]} : vector<8x96xf32> to vector<8x32xf32>
    %167 = vector.extract_strided_slice %165 {offsets = [0, 32], sizes = [8, 32], strides = [1, 1]} : vector<8x96xf32> to vector<8x32xf32>
    %168 = vector.extract_strided_slice %165 {offsets = [0, 64], sizes = [8, 32], strides = [1, 1]} : vector<8x96xf32> to vector<8x32xf32>
    %169 = vector.extract_strided_slice %157 {offsets = [0, 96], sizes = [8, 32], strides = [1, 1]} : vector<8x128xf32> to vector<8x32xf32>
    %170 = math.tanh %169 : vector<8x32xf32>
    %171 = arith.mulf %167, %159 : vector<8x32xf32>
    %172 = arith.mulf %166, %170 : vector<8x32xf32>
    %173 = arith.addf %171, %172 : vector<8x32xf32>
    %174 = math.tanh %173 : vector<8x32xf32>
    %175 = arith.mulf %168, %174 : vector<8x32xf32>
    %c0_89 = arith.constant 0 : index
    %c0_90 = arith.constant 0 : index
    %c0_91 = arith.constant 0 : index
    %176 = vector.load %arg7[%c0_89, %c0_90, %c0_91] : memref<2x8x32xf32, #tpu.memory_space<vmem>>, vector<1x8x32xf32>
    %177 = vector.shape_cast %176 : vector<1x8x32xf32> to vector<8x32xf32>
    %178 = vector.shape_cast %175 : vector<8x32xf32> to vector<1x8x32xf32>
    tpu.vector_store %arg7[%c0_89, %c0_90, %c0_91], %178 {strides = array<i32>} : memref<2x8x32xf32, #tpu.memory_space<vmem>>, vector<1x8x32xf32>,
    %c0_92 = arith.constant 0 : index
    %c0_93 = arith.constant 0 : index
    %c0_94 = arith.constant 0 : index
    %179 = vector.load %arg8[%c0_92, %c0_93, %c0_94] : memref<2x8x32xf32, #tpu.memory_space<vmem>>, vector<1x8x32xf32>
    %180 = vector.shape_cast %179 : vector<1x8x32xf32> to vector<8x32xf32>
    %181 = vector.shape_cast %173 : vector<8x32xf32> to vector<1x8x32xf32>
    tpu.vector_store %arg8[%c0_92, %c0_93, %c0_94], %181 {strides = array<i32>} : memref<2x8x32xf32, #tpu.memory_space<vmem>>, vector<1x8x32xf32>,
    %c1_95 = arith.constant 1 : index
    %c0_96 = arith.constant 0 : index
    %c0_97 = arith.constant 0 : index
    %182 = vector.load %arg7[%c1_95, %c0_96, %c0_97] : memref<2x8x32xf32, #tpu.memory_space<vmem>>, vector<1x8x32xf32>
    %183 = vector.shape_cast %182 : vector<1x8x32xf32> to vector<8x32xf32>
    %184 = tpu.concatenate %175, %183 in 1 : vector<8x32xf32>, vector<8x32xf32> -> vector<8x64xf32>
    %185 = arith.truncf %184 : vector<8x64xf32> to vector<8x64xbf16>
    %cst_98 = arith.constant dense<0.000000e+00> : vector<8x128xf32>
    %186 = tpu.matmul %185, %5, %cst_98 {dimension_numbers = #tpu.dot_dimension_numbers<[1], [0], [0], [1], [0, 0, 1, 1], [], []>} : vector<8x64xbf16>, vector<64x128xbf16>, vector<8x128xf32> -> vector<8x128xf32>
    %187 = vector.broadcast %6 : vector<1x128xf32> to vector<8x128xf32>
    %188 = arith.addf %186, %187 : vector<8x128xf32>
    %c1_99 = arith.constant 1 : index
    %c0_100 = arith.constant 0 : index
    %c0_101 = arith.constant 0 : index
    %189 = vector.load %arg8[%c1_99, %c0_100, %c0_101] : memref<2x8x32xf32, #tpu.memory_space<vmem>>, vector<1x8x32xf32>
    %190 = vector.shape_cast %189 : vector<1x8x32xf32> to vector<8x32xf32>
    %191 = vector.extract_strided_slice %188 {offsets = [0, 0], sizes = [8, 96], strides = [1, 1]} : vector<8x128xf32> to vector<8x96xf32>
    %192 = arith.negf %191 : vector<8x96xf32>
    %193 = math.exp %192 : vector<8x96xf32>
    %cst_102 = arith.constant 1.000000e+00 : f32
    %194 = vector.broadcast %cst_102 : f32 to vector<8x96xf32>
    %195 = arith.addf %194, %193 : vector<8x96xf32>
    %196 = arith.divf %194, %195 : vector<8x96xf32>
    %197 = vector.extract_strided_slice %196 {offsets = [0, 0], sizes = [8, 32], strides = [1, 1]} : vector<8x96xf32> to vector<8x32xf32>
    %198 = vector.extract_strided_slice %196 {offsets = [0, 32], sizes = [8, 32], strides = [1, 1]} : vector<8x96xf32> to vector<8x32xf32>
    %199 = vector.extract_strided_slice %196 {offsets = [0, 64], sizes = [8, 32], strides = [1, 1]} : vector<8x96xf32> to vector<8x32xf32>
    %200 = vector.extract_strided_slice %188 {offsets = [0, 96], sizes = [8, 32], strides = [1, 1]} : vector<8x128xf32> to vector<8x32xf32>
    %201 = math.tanh %200 : vector<8x32xf32>
    %202 = arith.mulf %198, %190 : vector<8x32xf32>
    %203 = arith.mulf %197, %201 : vector<8x32xf32>
    %204 = arith.addf %202, %203 : vector<8x32xf32>
    %205 = math.tanh %204 : vector<8x32xf32>
    %206 = arith.mulf %199, %205 : vector<8x32xf32>
    %c1_103 = arith.constant 1 : index
    %c0_104 = arith.constant 0 : index
    %c0_105 = arith.constant 0 : index
    %207 = vector.load %arg7[%c1_103, %c0_104, %c0_105] : memref<2x8x32xf32, #tpu.memory_space<vmem>>, vector<1x8x32xf32>
    %208 = vector.shape_cast %207 : vector<1x8x32xf32> to vector<8x32xf32>
    %209 = vector.shape_cast %206 : vector<8x32xf32> to vector<1x8x32xf32>
    tpu.vector_store %arg7[%c1_103, %c0_104, %c0_105], %209 {strides = array<i32>} : memref<2x8x32xf32, #tpu.memory_space<vmem>>, vector<1x8x32xf32>,
    %c1_106 = arith.constant 1 : index
    %c0_107 = arith.constant 0 : index
    %c0_108 = arith.constant 0 : index
    %210 = vector.load %arg8[%c1_106, %c0_107, %c0_108] : memref<2x8x32xf32, #tpu.memory_space<vmem>>, vector<1x8x32xf32>
    %211 = vector.shape_cast %210 : vector<1x8x32xf32> to vector<8x32xf32>
    %212 = vector.shape_cast %204 : vector<8x32xf32> to vector<1x8x32xf32>
    tpu.vector_store %arg8[%c1_106, %c0_107, %c0_108], %212 {strides = array<i32>} : memref<2x8x32xf32, #tpu.memory_space<vmem>>, vector<1x8x32xf32>,
    %213 = vector.broadcast %150 : i32 to vector<8x1xi32>
    %214 = arith.cmpi eq, %4, %213 : vector<8x1xi32>
    %215 = vector.shape_cast %214 : vector<8x1xi1> to vector<8x1xi1>
    %216 = vector.broadcast %215 : vector<8x1xi1> to vector<8x32xi1>
    %c0_109 = arith.constant 0 : index
    %c0_110 = arith.constant 0 : index
    %217 = vector.load %arg6[%c0_109, %c0_110] : memref<8x32xf32, #tpu.memory_space<vmem>>, vector<8x32xf32>
    %218 = arith.select %216, %206, %217 : vector<8x32xi1>, vector<8x32xf32>
    %c0_111 = arith.constant 0 : index
    %c0_112 = arith.constant 0 : index
    %219 = vector.load %arg6[%c0_111, %c0_112] : memref<8x32xf32, #tpu.memory_space<vmem>>, vector<8x32xf32>
    tpu.vector_store %arg6[%c0_111, %c0_112], %218 {strides = array<i32>} : memref<8x32xf32, #tpu.memory_space<vmem>>, vector<8x32xf32>,
    %c8_i32_113 = arith.constant 8 : i32
    %220 = arith.muli %arg0, %c8_i32_113 : i32
    %c3_i32 = arith.constant 3 : i32
    %221 = arith.addi %220, %c3_i32 : i32
    %c3 = arith.constant 3 : index
    %c0_114 = arith.constant 0 : index
    %c0_115 = arith.constant 0 : index
    %222 = vector.load %arg1[%c3, %c0_114, %c0_115] : memref<8x8x128xf32, #tpu.memory_space<vmem>>, vector<1x8x128xf32>
    %223 = vector.shape_cast %222 : vector<1x8x128xf32> to vector<8x128xf32>
    %c0_116 = arith.constant 0 : index
    %c0_117 = arith.constant 0 : index
    %c0_118 = arith.constant 0 : index
    %224 = vector.load %arg7[%c0_116, %c0_117, %c0_118] : memref<2x8x32xf32, #tpu.memory_space<vmem>>, vector<1x8x32xf32>
    %225 = vector.shape_cast %224 : vector<1x8x32xf32> to vector<8x32xf32>
    %226 = arith.truncf %225 : vector<8x32xf32> to vector<8x32xbf16>
    %cst_119 = arith.constant dense<0.000000e+00> : vector<8x128xf32>
    %227 = tpu.matmul %226, %3, %cst_119 {dimension_numbers = #tpu.dot_dimension_numbers<[1], [0], [0], [1], [0, 0, 1, 1], [], []>} : vector<8x32xbf16>, vector<32x128xbf16>, vector<8x128xf32> -> vector<8x128xf32>
    %228 = arith.addf %223, %227 : vector<8x128xf32>
    %c0_120 = arith.constant 0 : index
    %c0_121 = arith.constant 0 : index
    %c0_122 = arith.constant 0 : index
    %229 = vector.load %arg8[%c0_120, %c0_121, %c0_122] : memref<2x8x32xf32, #tpu.memory_space<vmem>>, vector<1x8x32xf32>
    %230 = vector.shape_cast %229 : vector<1x8x32xf32> to vector<8x32xf32>
    %231 = vector.extract_strided_slice %228 {offsets = [0, 0], sizes = [8, 96], strides = [1, 1]} : vector<8x128xf32> to vector<8x96xf32>
    %232 = arith.negf %231 : vector<8x96xf32>
    %233 = math.exp %232 : vector<8x96xf32>
    %cst_123 = arith.constant 1.000000e+00 : f32
    %234 = vector.broadcast %cst_123 : f32 to vector<8x96xf32>
    %235 = arith.addf %234, %233 : vector<8x96xf32>
    %236 = arith.divf %234, %235 : vector<8x96xf32>
    %237 = vector.extract_strided_slice %236 {offsets = [0, 0], sizes = [8, 32], strides = [1, 1]} : vector<8x96xf32> to vector<8x32xf32>
    %238 = vector.extract_strided_slice %236 {offsets = [0, 32], sizes = [8, 32], strides = [1, 1]} : vector<8x96xf32> to vector<8x32xf32>
    %239 = vector.extract_strided_slice %236 {offsets = [0, 64], sizes = [8, 32], strides = [1, 1]} : vector<8x96xf32> to vector<8x32xf32>
    %240 = vector.extract_strided_slice %228 {offsets = [0, 96], sizes = [8, 32], strides = [1, 1]} : vector<8x128xf32> to vector<8x32xf32>
    %241 = math.tanh %240 : vector<8x32xf32>
    %242 = arith.mulf %238, %230 : vector<8x32xf32>
    %243 = arith.mulf %237, %241 : vector<8x32xf32>
    %244 = arith.addf %242, %243 : vector<8x32xf32>
    %245 = math.tanh %244 : vector<8x32xf32>
    %246 = arith.mulf %239, %245 : vector<8x32xf32>
    %c0_124 = arith.constant 0 : index
    %c0_125 = arith.constant 0 : index
    %c0_126 = arith.constant 0 : index
    %247 = vector.load %arg7[%c0_124, %c0_125, %c0_126] : memref<2x8x32xf32, #tpu.memory_space<vmem>>, vector<1x8x32xf32>
    %248 = vector.shape_cast %247 : vector<1x8x32xf32> to vector<8x32xf32>
    %249 = vector.shape_cast %246 : vector<8x32xf32> to vector<1x8x32xf32>
    tpu.vector_store %arg7[%c0_124, %c0_125, %c0_126], %249 {strides = array<i32>} : memref<2x8x32xf32, #tpu.memory_space<vmem>>, vector<1x8x32xf32>,
    %c0_127 = arith.constant 0 : index
    %c0_128 = arith.constant 0 : index
    %c0_129 = arith.constant 0 : index
    %250 = vector.load %arg8[%c0_127, %c0_128, %c0_129] : memref<2x8x32xf32, #tpu.memory_space<vmem>>, vector<1x8x32xf32>
    %251 = vector.shape_cast %250 : vector<1x8x32xf32> to vector<8x32xf32>
    %252 = vector.shape_cast %244 : vector<8x32xf32> to vector<1x8x32xf32>
    tpu.vector_store %arg8[%c0_127, %c0_128, %c0_129], %252 {strides = array<i32>} : memref<2x8x32xf32, #tpu.memory_space<vmem>>, vector<1x8x32xf32>,
    %c1_130 = arith.constant 1 : index
    %c0_131 = arith.constant 0 : index
    %c0_132 = arith.constant 0 : index
    %253 = vector.load %arg7[%c1_130, %c0_131, %c0_132] : memref<2x8x32xf32, #tpu.memory_space<vmem>>, vector<1x8x32xf32>
    %254 = vector.shape_cast %253 : vector<1x8x32xf32> to vector<8x32xf32>
    %255 = tpu.concatenate %246, %254 in 1 : vector<8x32xf32>, vector<8x32xf32> -> vector<8x64xf32>
    %256 = arith.truncf %255 : vector<8x64xf32> to vector<8x64xbf16>
    %cst_133 = arith.constant dense<0.000000e+00> : vector<8x128xf32>
    %257 = tpu.matmul %256, %5, %cst_133 {dimension_numbers = #tpu.dot_dimension_numbers<[1], [0], [0], [1], [0, 0, 1, 1], [], []>} : vector<8x64xbf16>, vector<64x128xbf16>, vector<8x128xf32> -> vector<8x128xf32>
    %258 = vector.broadcast %6 : vector<1x128xf32> to vector<8x128xf32>
    %259 = arith.addf %257, %258 : vector<8x128xf32>
    %c1_134 = arith.constant 1 : index
    %c0_135 = arith.constant 0 : index
    %c0_136 = arith.constant 0 : index
    %260 = vector.load %arg8[%c1_134, %c0_135, %c0_136] : memref<2x8x32xf32, #tpu.memory_space<vmem>>, vector<1x8x32xf32>
    %261 = vector.shape_cast %260 : vector<1x8x32xf32> to vector<8x32xf32>
    %262 = vector.extract_strided_slice %259 {offsets = [0, 0], sizes = [8, 96], strides = [1, 1]} : vector<8x128xf32> to vector<8x96xf32>
    %263 = arith.negf %262 : vector<8x96xf32>
    %264 = math.exp %263 : vector<8x96xf32>
    %cst_137 = arith.constant 1.000000e+00 : f32
    %265 = vector.broadcast %cst_137 : f32 to vector<8x96xf32>
    %266 = arith.addf %265, %264 : vector<8x96xf32>
    %267 = arith.divf %265, %266 : vector<8x96xf32>
    %268 = vector.extract_strided_slice %267 {offsets = [0, 0], sizes = [8, 32], strides = [1, 1]} : vector<8x96xf32> to vector<8x32xf32>
    %269 = vector.extract_strided_slice %267 {offsets = [0, 32], sizes = [8, 32], strides = [1, 1]} : vector<8x96xf32> to vector<8x32xf32>
    %270 = vector.extract_strided_slice %267 {offsets = [0, 64], sizes = [8, 32], strides = [1, 1]} : vector<8x96xf32> to vector<8x32xf32>
    %271 = vector.extract_strided_slice %259 {offsets = [0, 96], sizes = [8, 32], strides = [1, 1]} : vector<8x128xf32> to vector<8x32xf32>
    %272 = math.tanh %271 : vector<8x32xf32>
    %273 = arith.mulf %269, %261 : vector<8x32xf32>
    %274 = arith.mulf %268, %272 : vector<8x32xf32>
    %275 = arith.addf %273, %274 : vector<8x32xf32>
    %276 = math.tanh %275 : vector<8x32xf32>
    %277 = arith.mulf %270, %276 : vector<8x32xf32>
    %c1_138 = arith.constant 1 : index
    %c0_139 = arith.constant 0 : index
    %c0_140 = arith.constant 0 : index
    %278 = vector.load %arg7[%c1_138, %c0_139, %c0_140] : memref<2x8x32xf32, #tpu.memory_space<vmem>>, vector<1x8x32xf32>
    %279 = vector.shape_cast %278 : vector<1x8x32xf32> to vector<8x32xf32>
    %280 = vector.shape_cast %277 : vector<8x32xf32> to vector<1x8x32xf32>
    tpu.vector_store %arg7[%c1_138, %c0_139, %c0_140], %280 {strides = array<i32>} : memref<2x8x32xf32, #tpu.memory_space<vmem>>, vector<1x8x32xf32>,
    %c1_141 = arith.constant 1 : index
    %c0_142 = arith.constant 0 : index
    %c0_143 = arith.constant 0 : index
    %281 = vector.load %arg8[%c1_141, %c0_142, %c0_143] : memref<2x8x32xf32, #tpu.memory_space<vmem>>, vector<1x8x32xf32>
    %282 = vector.shape_cast %281 : vector<1x8x32xf32> to vector<8x32xf32>
    %283 = vector.shape_cast %275 : vector<8x32xf32> to vector<1x8x32xf32>
    tpu.vector_store %arg8[%c1_141, %c0_142, %c0_143], %283 {strides = array<i32>} : memref<2x8x32xf32, #tpu.memory_space<vmem>>, vector<1x8x32xf32>,
    %284 = vector.broadcast %221 : i32 to vector<8x1xi32>
    %285 = arith.cmpi eq, %4, %284 : vector<8x1xi32>
    %286 = vector.shape_cast %285 : vector<8x1xi1> to vector<8x1xi1>
    %287 = vector.broadcast %286 : vector<8x1xi1> to vector<8x32xi1>
    %c0_144 = arith.constant 0 : index
    %c0_145 = arith.constant 0 : index
    %288 = vector.load %arg6[%c0_144, %c0_145] : memref<8x32xf32, #tpu.memory_space<vmem>>, vector<8x32xf32>
    %289 = arith.select %287, %277, %288 : vector<8x32xi1>, vector<8x32xf32>
    %c0_146 = arith.constant 0 : index
    %c0_147 = arith.constant 0 : index
    %290 = vector.load %arg6[%c0_146, %c0_147] : memref<8x32xf32, #tpu.memory_space<vmem>>, vector<8x32xf32>
    tpu.vector_store %arg6[%c0_146, %c0_147], %289 {strides = array<i32>} : memref<8x32xf32, #tpu.memory_space<vmem>>, vector<8x32xf32>,
    %c8_i32_148 = arith.constant 8 : i32
    %291 = arith.muli %arg0, %c8_i32_148 : i32
    %c4_i32 = arith.constant 4 : i32
    %292 = arith.addi %291, %c4_i32 : i32
    %c4 = arith.constant 4 : index
    %c0_149 = arith.constant 0 : index
    %c0_150 = arith.constant 0 : index
    %293 = vector.load %arg1[%c4, %c0_149, %c0_150] : memref<8x8x128xf32, #tpu.memory_space<vmem>>, vector<1x8x128xf32>
    %294 = vector.shape_cast %293 : vector<1x8x128xf32> to vector<8x128xf32>
    %c0_151 = arith.constant 0 : index
    %c0_152 = arith.constant 0 : index
    %c0_153 = arith.constant 0 : index
    %295 = vector.load %arg7[%c0_151, %c0_152, %c0_153] : memref<2x8x32xf32, #tpu.memory_space<vmem>>, vector<1x8x32xf32>
    %296 = vector.shape_cast %295 : vector<1x8x32xf32> to vector<8x32xf32>
    %297 = arith.truncf %296 : vector<8x32xf32> to vector<8x32xbf16>
    %cst_154 = arith.constant dense<0.000000e+00> : vector<8x128xf32>
    %298 = tpu.matmul %297, %3, %cst_154 {dimension_numbers = #tpu.dot_dimension_numbers<[1], [0], [0], [1], [0, 0, 1, 1], [], []>} : vector<8x32xbf16>, vector<32x128xbf16>, vector<8x128xf32> -> vector<8x128xf32>
    %299 = arith.addf %294, %298 : vector<8x128xf32>
    %c0_155 = arith.constant 0 : index
    %c0_156 = arith.constant 0 : index
    %c0_157 = arith.constant 0 : index
    %300 = vector.load %arg8[%c0_155, %c0_156, %c0_157] : memref<2x8x32xf32, #tpu.memory_space<vmem>>, vector<1x8x32xf32>
    %301 = vector.shape_cast %300 : vector<1x8x32xf32> to vector<8x32xf32>
    %302 = vector.extract_strided_slice %299 {offsets = [0, 0], sizes = [8, 96], strides = [1, 1]} : vector<8x128xf32> to vector<8x96xf32>
    %303 = arith.negf %302 : vector<8x96xf32>
    %304 = math.exp %303 : vector<8x96xf32>
    %cst_158 = arith.constant 1.000000e+00 : f32
    %305 = vector.broadcast %cst_158 : f32 to vector<8x96xf32>
    %306 = arith.addf %305, %304 : vector<8x96xf32>
    %307 = arith.divf %305, %306 : vector<8x96xf32>
    %308 = vector.extract_strided_slice %307 {offsets = [0, 0], sizes = [8, 32], strides = [1, 1]} : vector<8x96xf32> to vector<8x32xf32>
    %309 = vector.extract_strided_slice %307 {offsets = [0, 32], sizes = [8, 32], strides = [1, 1]} : vector<8x96xf32> to vector<8x32xf32>
    %310 = vector.extract_strided_slice %307 {offsets = [0, 64], sizes = [8, 32], strides = [1, 1]} : vector<8x96xf32> to vector<8x32xf32>
    %311 = vector.extract_strided_slice %299 {offsets = [0, 96], sizes = [8, 32], strides = [1, 1]} : vector<8x128xf32> to vector<8x32xf32>
    %312 = math.tanh %311 : vector<8x32xf32>
    %313 = arith.mulf %309, %301 : vector<8x32xf32>
    %314 = arith.mulf %308, %312 : vector<8x32xf32>
    %315 = arith.addf %313, %314 : vector<8x32xf32>
    %316 = math.tanh %315 : vector<8x32xf32>
    %317 = arith.mulf %310, %316 : vector<8x32xf32>
    %c0_159 = arith.constant 0 : index
    %c0_160 = arith.constant 0 : index
    %c0_161 = arith.constant 0 : index
    %318 = vector.load %arg7[%c0_159, %c0_160, %c0_161] : memref<2x8x32xf32, #tpu.memory_space<vmem>>, vector<1x8x32xf32>
    %319 = vector.shape_cast %318 : vector<1x8x32xf32> to vector<8x32xf32>
    %320 = vector.shape_cast %317 : vector<8x32xf32> to vector<1x8x32xf32>
    tpu.vector_store %arg7[%c0_159, %c0_160, %c0_161], %320 {strides = array<i32>} : memref<2x8x32xf32, #tpu.memory_space<vmem>>, vector<1x8x32xf32>,
    %c0_162 = arith.constant 0 : index
    %c0_163 = arith.constant 0 : index
    %c0_164 = arith.constant 0 : index
    %321 = vector.load %arg8[%c0_162, %c0_163, %c0_164] : memref<2x8x32xf32, #tpu.memory_space<vmem>>, vector<1x8x32xf32>
    %322 = vector.shape_cast %321 : vector<1x8x32xf32> to vector<8x32xf32>
    %323 = vector.shape_cast %315 : vector<8x32xf32> to vector<1x8x32xf32>
    tpu.vector_store %arg8[%c0_162, %c0_163, %c0_164], %323 {strides = array<i32>} : memref<2x8x32xf32, #tpu.memory_space<vmem>>, vector<1x8x32xf32>,
    %c1_165 = arith.constant 1 : index
    %c0_166 = arith.constant 0 : index
    %c0_167 = arith.constant 0 : index
    %324 = vector.load %arg7[%c1_165, %c0_166, %c0_167] : memref<2x8x32xf32, #tpu.memory_space<vmem>>, vector<1x8x32xf32>
    %325 = vector.shape_cast %324 : vector<1x8x32xf32> to vector<8x32xf32>
    %326 = tpu.concatenate %317, %325 in 1 : vector<8x32xf32>, vector<8x32xf32> -> vector<8x64xf32>
    %327 = arith.truncf %326 : vector<8x64xf32> to vector<8x64xbf16>
    %cst_168 = arith.constant dense<0.000000e+00> : vector<8x128xf32>
    %328 = tpu.matmul %327, %5, %cst_168 {dimension_numbers = #tpu.dot_dimension_numbers<[1], [0], [0], [1], [0, 0, 1, 1], [], []>} : vector<8x64xbf16>, vector<64x128xbf16>, vector<8x128xf32> -> vector<8x128xf32>
    %329 = vector.broadcast %6 : vector<1x128xf32> to vector<8x128xf32>
    %330 = arith.addf %328, %329 : vector<8x128xf32>
    %c1_169 = arith.constant 1 : index
    %c0_170 = arith.constant 0 : index
    %c0_171 = arith.constant 0 : index
    %331 = vector.load %arg8[%c1_169, %c0_170, %c0_171] : memref<2x8x32xf32, #tpu.memory_space<vmem>>, vector<1x8x32xf32>
    %332 = vector.shape_cast %331 : vector<1x8x32xf32> to vector<8x32xf32>
    %333 = vector.extract_strided_slice %330 {offsets = [0, 0], sizes = [8, 96], strides = [1, 1]} : vector<8x128xf32> to vector<8x96xf32>
    %334 = arith.negf %333 : vector<8x96xf32>
    %335 = math.exp %334 : vector<8x96xf32>
    %cst_172 = arith.constant 1.000000e+00 : f32
    %336 = vector.broadcast %cst_172 : f32 to vector<8x96xf32>
    %337 = arith.addf %336, %335 : vector<8x96xf32>
    %338 = arith.divf %336, %337 : vector<8x96xf32>
    %339 = vector.extract_strided_slice %338 {offsets = [0, 0], sizes = [8, 32], strides = [1, 1]} : vector<8x96xf32> to vector<8x32xf32>
    %340 = vector.extract_strided_slice %338 {offsets = [0, 32], sizes = [8, 32], strides = [1, 1]} : vector<8x96xf32> to vector<8x32xf32>
    %341 = vector.extract_strided_slice %338 {offsets = [0, 64], sizes = [8, 32], strides = [1, 1]} : vector<8x96xf32> to vector<8x32xf32>
    %342 = vector.extract_strided_slice %330 {offsets = [0, 96], sizes = [8, 32], strides = [1, 1]} : vector<8x128xf32> to vector<8x32xf32>
    %343 = math.tanh %342 : vector<8x32xf32>
    %344 = arith.mulf %340, %332 : vector<8x32xf32>
    %345 = arith.mulf %339, %343 : vector<8x32xf32>
    %346 = arith.addf %344, %345 : vector<8x32xf32>
    %347 = math.tanh %346 : vector<8x32xf32>
    %348 = arith.mulf %341, %347 : vector<8x32xf32>
    %c1_173 = arith.constant 1 : index
    %c0_174 = arith.constant 0 : index
    %c0_175 = arith.constant 0 : index
    %349 = vector.load %arg7[%c1_173, %c0_174, %c0_175] : memref<2x8x32xf32, #tpu.memory_space<vmem>>, vector<1x8x32xf32>
    %350 = vector.shape_cast %349 : vector<1x8x32xf32> to vector<8x32xf32>
    %351 = vector.shape_cast %348 : vector<8x32xf32> to vector<1x8x32xf32>
    tpu.vector_store %arg7[%c1_173, %c0_174, %c0_175], %351 {strides = array<i32>} : memref<2x8x32xf32, #tpu.memory_space<vmem>>, vector<1x8x32xf32>,
    %c1_176 = arith.constant 1 : index
    %c0_177 = arith.constant 0 : index
    %c0_178 = arith.constant 0 : index
    %352 = vector.load %arg8[%c1_176, %c0_177, %c0_178] : memref<2x8x32xf32, #tpu.memory_space<vmem>>, vector<1x8x32xf32>
    %353 = vector.shape_cast %352 : vector<1x8x32xf32> to vector<8x32xf32>
    %354 = vector.shape_cast %346 : vector<8x32xf32> to vector<1x8x32xf32>
    tpu.vector_store %arg8[%c1_176, %c0_177, %c0_178], %354 {strides = array<i32>} : memref<2x8x32xf32, #tpu.memory_space<vmem>>, vector<1x8x32xf32>,
    %355 = vector.broadcast %292 : i32 to vector<8x1xi32>
    %356 = arith.cmpi eq, %4, %355 : vector<8x1xi32>
    %357 = vector.shape_cast %356 : vector<8x1xi1> to vector<8x1xi1>
    %358 = vector.broadcast %357 : vector<8x1xi1> to vector<8x32xi1>
    %c0_179 = arith.constant 0 : index
    %c0_180 = arith.constant 0 : index
    %359 = vector.load %arg6[%c0_179, %c0_180] : memref<8x32xf32, #tpu.memory_space<vmem>>, vector<8x32xf32>
    %360 = arith.select %358, %348, %359 : vector<8x32xi1>, vector<8x32xf32>
    %c0_181 = arith.constant 0 : index
    %c0_182 = arith.constant 0 : index
    %361 = vector.load %arg6[%c0_181, %c0_182] : memref<8x32xf32, #tpu.memory_space<vmem>>, vector<8x32xf32>
    tpu.vector_store %arg6[%c0_181, %c0_182], %360 {strides = array<i32>} : memref<8x32xf32, #tpu.memory_space<vmem>>, vector<8x32xf32>,
    %c8_i32_183 = arith.constant 8 : i32
    %362 = arith.muli %arg0, %c8_i32_183 : i32
    %c5_i32 = arith.constant 5 : i32
    %363 = arith.addi %362, %c5_i32 : i32
    %c5 = arith.constant 5 : index
    %c0_184 = arith.constant 0 : index
    %c0_185 = arith.constant 0 : index
    %364 = vector.load %arg1[%c5, %c0_184, %c0_185] : memref<8x8x128xf32, #tpu.memory_space<vmem>>, vector<1x8x128xf32>
    %365 = vector.shape_cast %364 : vector<1x8x128xf32> to vector<8x128xf32>
    %c0_186 = arith.constant 0 : index
    %c0_187 = arith.constant 0 : index
    %c0_188 = arith.constant 0 : index
    %366 = vector.load %arg7[%c0_186, %c0_187, %c0_188] : memref<2x8x32xf32, #tpu.memory_space<vmem>>, vector<1x8x32xf32>
    %367 = vector.shape_cast %366 : vector<1x8x32xf32> to vector<8x32xf32>
    %368 = arith.truncf %367 : vector<8x32xf32> to vector<8x32xbf16>
    %cst_189 = arith.constant dense<0.000000e+00> : vector<8x128xf32>
    %369 = tpu.matmul %368, %3, %cst_189 {dimension_numbers = #tpu.dot_dimension_numbers<[1], [0], [0], [1], [0, 0, 1, 1], [], []>} : vector<8x32xbf16>, vector<32x128xbf16>, vector<8x128xf32> -> vector<8x128xf32>
    %370 = arith.addf %365, %369 : vector<8x128xf32>
    %c0_190 = arith.constant 0 : index
    %c0_191 = arith.constant 0 : index
    %c0_192 = arith.constant 0 : index
    %371 = vector.load %arg8[%c0_190, %c0_191, %c0_192] : memref<2x8x32xf32, #tpu.memory_space<vmem>>, vector<1x8x32xf32>
    %372 = vector.shape_cast %371 : vector<1x8x32xf32> to vector<8x32xf32>
    %373 = vector.extract_strided_slice %370 {offsets = [0, 0], sizes = [8, 96], strides = [1, 1]} : vector<8x128xf32> to vector<8x96xf32>
    %374 = arith.negf %373 : vector<8x96xf32>
    %375 = math.exp %374 : vector<8x96xf32>
    %cst_193 = arith.constant 1.000000e+00 : f32
    %376 = vector.broadcast %cst_193 : f32 to vector<8x96xf32>
    %377 = arith.addf %376, %375 : vector<8x96xf32>
    %378 = arith.divf %376, %377 : vector<8x96xf32>
    %379 = vector.extract_strided_slice %378 {offsets = [0, 0], sizes = [8, 32], strides = [1, 1]} : vector<8x96xf32> to vector<8x32xf32>
    %380 = vector.extract_strided_slice %378 {offsets = [0, 32], sizes = [8, 32], strides = [1, 1]} : vector<8x96xf32> to vector<8x32xf32>
    %381 = vector.extract_strided_slice %378 {offsets = [0, 64], sizes = [8, 32], strides = [1, 1]} : vector<8x96xf32> to vector<8x32xf32>
    %382 = vector.extract_strided_slice %370 {offsets = [0, 96], sizes = [8, 32], strides = [1, 1]} : vector<8x128xf32> to vector<8x32xf32>
    %383 = math.tanh %382 : vector<8x32xf32>
    %384 = arith.mulf %380, %372 : vector<8x32xf32>
    %385 = arith.mulf %379, %383 : vector<8x32xf32>
    %386 = arith.addf %384, %385 : vector<8x32xf32>
    %387 = math.tanh %386 : vector<8x32xf32>
    %388 = arith.mulf %381, %387 : vector<8x32xf32>
    %c0_194 = arith.constant 0 : index
    %c0_195 = arith.constant 0 : index
    %c0_196 = arith.constant 0 : index
    %389 = vector.load %arg7[%c0_194, %c0_195, %c0_196] : memref<2x8x32xf32, #tpu.memory_space<vmem>>, vector<1x8x32xf32>
    %390 = vector.shape_cast %389 : vector<1x8x32xf32> to vector<8x32xf32>
    %391 = vector.shape_cast %388 : vector<8x32xf32> to vector<1x8x32xf32>
    tpu.vector_store %arg7[%c0_194, %c0_195, %c0_196], %391 {strides = array<i32>} : memref<2x8x32xf32, #tpu.memory_space<vmem>>, vector<1x8x32xf32>,
    %c0_197 = arith.constant 0 : index
    %c0_198 = arith.constant 0 : index
    %c0_199 = arith.constant 0 : index
    %392 = vector.load %arg8[%c0_197, %c0_198, %c0_199] : memref<2x8x32xf32, #tpu.memory_space<vmem>>, vector<1x8x32xf32>
    %393 = vector.shape_cast %392 : vector<1x8x32xf32> to vector<8x32xf32>
    %394 = vector.shape_cast %386 : vector<8x32xf32> to vector<1x8x32xf32>
    tpu.vector_store %arg8[%c0_197, %c0_198, %c0_199], %394 {strides = array<i32>} : memref<2x8x32xf32, #tpu.memory_space<vmem>>, vector<1x8x32xf32>,
    %c1_200 = arith.constant 1 : index
    %c0_201 = arith.constant 0 : index
    %c0_202 = arith.constant 0 : index
    %395 = vector.load %arg7[%c1_200, %c0_201, %c0_202] : memref<2x8x32xf32, #tpu.memory_space<vmem>>, vector<1x8x32xf32>
    %396 = vector.shape_cast %395 : vector<1x8x32xf32> to vector<8x32xf32>
    %397 = tpu.concatenate %388, %396 in 1 : vector<8x32xf32>, vector<8x32xf32> -> vector<8x64xf32>
    %398 = arith.truncf %397 : vector<8x64xf32> to vector<8x64xbf16>
    %cst_203 = arith.constant dense<0.000000e+00> : vector<8x128xf32>
    %399 = tpu.matmul %398, %5, %cst_203 {dimension_numbers = #tpu.dot_dimension_numbers<[1], [0], [0], [1], [0, 0, 1, 1], [], []>} : vector<8x64xbf16>, vector<64x128xbf16>, vector<8x128xf32> -> vector<8x128xf32>
    %400 = vector.broadcast %6 : vector<1x128xf32> to vector<8x128xf32>
    %401 = arith.addf %399, %400 : vector<8x128xf32>
    %c1_204 = arith.constant 1 : index
    %c0_205 = arith.constant 0 : index
    %c0_206 = arith.constant 0 : index
    %402 = vector.load %arg8[%c1_204, %c0_205, %c0_206] : memref<2x8x32xf32, #tpu.memory_space<vmem>>, vector<1x8x32xf32>
    %403 = vector.shape_cast %402 : vector<1x8x32xf32> to vector<8x32xf32>
    %404 = vector.extract_strided_slice %401 {offsets = [0, 0], sizes = [8, 96], strides = [1, 1]} : vector<8x128xf32> to vector<8x96xf32>
    %405 = arith.negf %404 : vector<8x96xf32>
    %406 = math.exp %405 : vector<8x96xf32>
    %cst_207 = arith.constant 1.000000e+00 : f32
    %407 = vector.broadcast %cst_207 : f32 to vector<8x96xf32>
    %408 = arith.addf %407, %406 : vector<8x96xf32>
    %409 = arith.divf %407, %408 : vector<8x96xf32>
    %410 = vector.extract_strided_slice %409 {offsets = [0, 0], sizes = [8, 32], strides = [1, 1]} : vector<8x96xf32> to vector<8x32xf32>
    %411 = vector.extract_strided_slice %409 {offsets = [0, 32], sizes = [8, 32], strides = [1, 1]} : vector<8x96xf32> to vector<8x32xf32>
    %412 = vector.extract_strided_slice %409 {offsets = [0, 64], sizes = [8, 32], strides = [1, 1]} : vector<8x96xf32> to vector<8x32xf32>
    %413 = vector.extract_strided_slice %401 {offsets = [0, 96], sizes = [8, 32], strides = [1, 1]} : vector<8x128xf32> to vector<8x32xf32>
    %414 = math.tanh %413 : vector<8x32xf32>
    %415 = arith.mulf %411, %403 : vector<8x32xf32>
    %416 = arith.mulf %410, %414 : vector<8x32xf32>
    %417 = arith.addf %415, %416 : vector<8x32xf32>
    %418 = math.tanh %417 : vector<8x32xf32>
    %419 = arith.mulf %412, %418 : vector<8x32xf32>
    %c1_208 = arith.constant 1 : index
    %c0_209 = arith.constant 0 : index
    %c0_210 = arith.constant 0 : index
    %420 = vector.load %arg7[%c1_208, %c0_209, %c0_210] : memref<2x8x32xf32, #tpu.memory_space<vmem>>, vector<1x8x32xf32>
    %421 = vector.shape_cast %420 : vector<1x8x32xf32> to vector<8x32xf32>
    %422 = vector.shape_cast %419 : vector<8x32xf32> to vector<1x8x32xf32>
    tpu.vector_store %arg7[%c1_208, %c0_209, %c0_210], %422 {strides = array<i32>} : memref<2x8x32xf32, #tpu.memory_space<vmem>>, vector<1x8x32xf32>,
    %c1_211 = arith.constant 1 : index
    %c0_212 = arith.constant 0 : index
    %c0_213 = arith.constant 0 : index
    %423 = vector.load %arg8[%c1_211, %c0_212, %c0_213] : memref<2x8x32xf32, #tpu.memory_space<vmem>>, vector<1x8x32xf32>
    %424 = vector.shape_cast %423 : vector<1x8x32xf32> to vector<8x32xf32>
    %425 = vector.shape_cast %417 : vector<8x32xf32> to vector<1x8x32xf32>
    tpu.vector_store %arg8[%c1_211, %c0_212, %c0_213], %425 {strides = array<i32>} : memref<2x8x32xf32, #tpu.memory_space<vmem>>, vector<1x8x32xf32>,
    %426 = vector.broadcast %363 : i32 to vector<8x1xi32>
    %427 = arith.cmpi eq, %4, %426 : vector<8x1xi32>
    %428 = vector.shape_cast %427 : vector<8x1xi1> to vector<8x1xi1>
    %429 = vector.broadcast %428 : vector<8x1xi1> to vector<8x32xi1>
    %c0_214 = arith.constant 0 : index
    %c0_215 = arith.constant 0 : index
    %430 = vector.load %arg6[%c0_214, %c0_215] : memref<8x32xf32, #tpu.memory_space<vmem>>, vector<8x32xf32>
    %431 = arith.select %429, %419, %430 : vector<8x32xi1>, vector<8x32xf32>
    %c0_216 = arith.constant 0 : index
    %c0_217 = arith.constant 0 : index
    %432 = vector.load %arg6[%c0_216, %c0_217] : memref<8x32xf32, #tpu.memory_space<vmem>>, vector<8x32xf32>
    tpu.vector_store %arg6[%c0_216, %c0_217], %431 {strides = array<i32>} : memref<8x32xf32, #tpu.memory_space<vmem>>, vector<8x32xf32>,
    %c8_i32_218 = arith.constant 8 : i32
    %433 = arith.muli %arg0, %c8_i32_218 : i32
    %c6_i32 = arith.constant 6 : i32
    %434 = arith.addi %433, %c6_i32 : i32
    %c6 = arith.constant 6 : index
    %c0_219 = arith.constant 0 : index
    %c0_220 = arith.constant 0 : index
    %435 = vector.load %arg1[%c6, %c0_219, %c0_220] : memref<8x8x128xf32, #tpu.memory_space<vmem>>, vector<1x8x128xf32>
    %436 = vector.shape_cast %435 : vector<1x8x128xf32> to vector<8x128xf32>
    %c0_221 = arith.constant 0 : index
    %c0_222 = arith.constant 0 : index
    %c0_223 = arith.constant 0 : index
    %437 = vector.load %arg7[%c0_221, %c0_222, %c0_223] : memref<2x8x32xf32, #tpu.memory_space<vmem>>, vector<1x8x32xf32>
    %438 = vector.shape_cast %437 : vector<1x8x32xf32> to vector<8x32xf32>
    %439 = arith.truncf %438 : vector<8x32xf32> to vector<8x32xbf16>
    %cst_224 = arith.constant dense<0.000000e+00> : vector<8x128xf32>
    %440 = tpu.matmul %439, %3, %cst_224 {dimension_numbers = #tpu.dot_dimension_numbers<[1], [0], [0], [1], [0, 0, 1, 1], [], []>} : vector<8x32xbf16>, vector<32x128xbf16>, vector<8x128xf32> -> vector<8x128xf32>
    %441 = arith.addf %436, %440 : vector<8x128xf32>
    %c0_225 = arith.constant 0 : index
    %c0_226 = arith.constant 0 : index
    %c0_227 = arith.constant 0 : index
    %442 = vector.load %arg8[%c0_225, %c0_226, %c0_227] : memref<2x8x32xf32, #tpu.memory_space<vmem>>, vector<1x8x32xf32>
    %443 = vector.shape_cast %442 : vector<1x8x32xf32> to vector<8x32xf32>
    %444 = vector.extract_strided_slice %441 {offsets = [0, 0], sizes = [8, 96], strides = [1, 1]} : vector<8x128xf32> to vector<8x96xf32>
    %445 = arith.negf %444 : vector<8x96xf32>
    %446 = math.exp %445 : vector<8x96xf32>
    %cst_228 = arith.constant 1.000000e+00 : f32
    %447 = vector.broadcast %cst_228 : f32 to vector<8x96xf32>
    %448 = arith.addf %447, %446 : vector<8x96xf32>
    %449 = arith.divf %447, %448 : vector<8x96xf32>
    %450 = vector.extract_strided_slice %449 {offsets = [0, 0], sizes = [8, 32], strides = [1, 1]} : vector<8x96xf32> to vector<8x32xf32>
    %451 = vector.extract_strided_slice %449 {offsets = [0, 32], sizes = [8, 32], strides = [1, 1]} : vector<8x96xf32> to vector<8x32xf32>
    %452 = vector.extract_strided_slice %449 {offsets = [0, 64], sizes = [8, 32], strides = [1, 1]} : vector<8x96xf32> to vector<8x32xf32>
    %453 = vector.extract_strided_slice %441 {offsets = [0, 96], sizes = [8, 32], strides = [1, 1]} : vector<8x128xf32> to vector<8x32xf32>
    %454 = math.tanh %453 : vector<8x32xf32>
    %455 = arith.mulf %451, %443 : vector<8x32xf32>
    %456 = arith.mulf %450, %454 : vector<8x32xf32>
    %457 = arith.addf %455, %456 : vector<8x32xf32>
    %458 = math.tanh %457 : vector<8x32xf32>
    %459 = arith.mulf %452, %458 : vector<8x32xf32>
    %c0_229 = arith.constant 0 : index
    %c0_230 = arith.constant 0 : index
    %c0_231 = arith.constant 0 : index
    %460 = vector.load %arg7[%c0_229, %c0_230, %c0_231] : memref<2x8x32xf32, #tpu.memory_space<vmem>>, vector<1x8x32xf32>
    %461 = vector.shape_cast %460 : vector<1x8x32xf32> to vector<8x32xf32>
    %462 = vector.shape_cast %459 : vector<8x32xf32> to vector<1x8x32xf32>
    tpu.vector_store %arg7[%c0_229, %c0_230, %c0_231], %462 {strides = array<i32>} : memref<2x8x32xf32, #tpu.memory_space<vmem>>, vector<1x8x32xf32>,
    %c0_232 = arith.constant 0 : index
    %c0_233 = arith.constant 0 : index
    %c0_234 = arith.constant 0 : index
    %463 = vector.load %arg8[%c0_232, %c0_233, %c0_234] : memref<2x8x32xf32, #tpu.memory_space<vmem>>, vector<1x8x32xf32>
    %464 = vector.shape_cast %463 : vector<1x8x32xf32> to vector<8x32xf32>
    %465 = vector.shape_cast %457 : vector<8x32xf32> to vector<1x8x32xf32>
    tpu.vector_store %arg8[%c0_232, %c0_233, %c0_234], %465 {strides = array<i32>} : memref<2x8x32xf32, #tpu.memory_space<vmem>>, vector<1x8x32xf32>,
    %c1_235 = arith.constant 1 : index
    %c0_236 = arith.constant 0 : index
    %c0_237 = arith.constant 0 : index
    %466 = vector.load %arg7[%c1_235, %c0_236, %c0_237] : memref<2x8x32xf32, #tpu.memory_space<vmem>>, vector<1x8x32xf32>
    %467 = vector.shape_cast %466 : vector<1x8x32xf32> to vector<8x32xf32>
    %468 = tpu.concatenate %459, %467 in 1 : vector<8x32xf32>, vector<8x32xf32> -> vector<8x64xf32>
    %469 = arith.truncf %468 : vector<8x64xf32> to vector<8x64xbf16>
    %cst_238 = arith.constant dense<0.000000e+00> : vector<8x128xf32>
    %470 = tpu.matmul %469, %5, %cst_238 {dimension_numbers = #tpu.dot_dimension_numbers<[1], [0], [0], [1], [0, 0, 1, 1], [], []>} : vector<8x64xbf16>, vector<64x128xbf16>, vector<8x128xf32> -> vector<8x128xf32>
    %471 = vector.broadcast %6 : vector<1x128xf32> to vector<8x128xf32>
    %472 = arith.addf %470, %471 : vector<8x128xf32>
    %c1_239 = arith.constant 1 : index
    %c0_240 = arith.constant 0 : index
    %c0_241 = arith.constant 0 : index
    %473 = vector.load %arg8[%c1_239, %c0_240, %c0_241] : memref<2x8x32xf32, #tpu.memory_space<vmem>>, vector<1x8x32xf32>
    %474 = vector.shape_cast %473 : vector<1x8x32xf32> to vector<8x32xf32>
    %475 = vector.extract_strided_slice %472 {offsets = [0, 0], sizes = [8, 96], strides = [1, 1]} : vector<8x128xf32> to vector<8x96xf32>
    %476 = arith.negf %475 : vector<8x96xf32>
    %477 = math.exp %476 : vector<8x96xf32>
    %cst_242 = arith.constant 1.000000e+00 : f32
    %478 = vector.broadcast %cst_242 : f32 to vector<8x96xf32>
    %479 = arith.addf %478, %477 : vector<8x96xf32>
    %480 = arith.divf %478, %479 : vector<8x96xf32>
    %481 = vector.extract_strided_slice %480 {offsets = [0, 0], sizes = [8, 32], strides = [1, 1]} : vector<8x96xf32> to vector<8x32xf32>
    %482 = vector.extract_strided_slice %480 {offsets = [0, 32], sizes = [8, 32], strides = [1, 1]} : vector<8x96xf32> to vector<8x32xf32>
    %483 = vector.extract_strided_slice %480 {offsets = [0, 64], sizes = [8, 32], strides = [1, 1]} : vector<8x96xf32> to vector<8x32xf32>
    %484 = vector.extract_strided_slice %472 {offsets = [0, 96], sizes = [8, 32], strides = [1, 1]} : vector<8x128xf32> to vector<8x32xf32>
    %485 = math.tanh %484 : vector<8x32xf32>
    %486 = arith.mulf %482, %474 : vector<8x32xf32>
    %487 = arith.mulf %481, %485 : vector<8x32xf32>
    %488 = arith.addf %486, %487 : vector<8x32xf32>
    %489 = math.tanh %488 : vector<8x32xf32>
    %490 = arith.mulf %483, %489 : vector<8x32xf32>
    %c1_243 = arith.constant 1 : index
    %c0_244 = arith.constant 0 : index
    %c0_245 = arith.constant 0 : index
    %491 = vector.load %arg7[%c1_243, %c0_244, %c0_245] : memref<2x8x32xf32, #tpu.memory_space<vmem>>, vector<1x8x32xf32>
    %492 = vector.shape_cast %491 : vector<1x8x32xf32> to vector<8x32xf32>
    %493 = vector.shape_cast %490 : vector<8x32xf32> to vector<1x8x32xf32>
    tpu.vector_store %arg7[%c1_243, %c0_244, %c0_245], %493 {strides = array<i32>} : memref<2x8x32xf32, #tpu.memory_space<vmem>>, vector<1x8x32xf32>,
    %c1_246 = arith.constant 1 : index
    %c0_247 = arith.constant 0 : index
    %c0_248 = arith.constant 0 : index
    %494 = vector.load %arg8[%c1_246, %c0_247, %c0_248] : memref<2x8x32xf32, #tpu.memory_space<vmem>>, vector<1x8x32xf32>
    %495 = vector.shape_cast %494 : vector<1x8x32xf32> to vector<8x32xf32>
    %496 = vector.shape_cast %488 : vector<8x32xf32> to vector<1x8x32xf32>
    tpu.vector_store %arg8[%c1_246, %c0_247, %c0_248], %496 {strides = array<i32>} : memref<2x8x32xf32, #tpu.memory_space<vmem>>, vector<1x8x32xf32>,
    %497 = vector.broadcast %434 : i32 to vector<8x1xi32>
    %498 = arith.cmpi eq, %4, %497 : vector<8x1xi32>
    %499 = vector.shape_cast %498 : vector<8x1xi1> to vector<8x1xi1>
    %500 = vector.broadcast %499 : vector<8x1xi1> to vector<8x32xi1>
    %c0_249 = arith.constant 0 : index
    %c0_250 = arith.constant 0 : index
    %501 = vector.load %arg6[%c0_249, %c0_250] : memref<8x32xf32, #tpu.memory_space<vmem>>, vector<8x32xf32>
    %502 = arith.select %500, %490, %501 : vector<8x32xi1>, vector<8x32xf32>
    %c0_251 = arith.constant 0 : index
    %c0_252 = arith.constant 0 : index
    %503 = vector.load %arg6[%c0_251, %c0_252] : memref<8x32xf32, #tpu.memory_space<vmem>>, vector<8x32xf32>
    tpu.vector_store %arg6[%c0_251, %c0_252], %502 {strides = array<i32>} : memref<8x32xf32, #tpu.memory_space<vmem>>, vector<8x32xf32>,
    %c8_i32_253 = arith.constant 8 : i32
    %504 = arith.muli %arg0, %c8_i32_253 : i32
    %c7_i32 = arith.constant 7 : i32
    %505 = arith.addi %504, %c7_i32 : i32
    %c7 = arith.constant 7 : index
    %c0_254 = arith.constant 0 : index
    %c0_255 = arith.constant 0 : index
    %506 = vector.load %arg1[%c7, %c0_254, %c0_255] : memref<8x8x128xf32, #tpu.memory_space<vmem>>, vector<1x8x128xf32>
    %507 = vector.shape_cast %506 : vector<1x8x128xf32> to vector<8x128xf32>
    %c0_256 = arith.constant 0 : index
    %c0_257 = arith.constant 0 : index
    %c0_258 = arith.constant 0 : index
    %508 = vector.load %arg7[%c0_256, %c0_257, %c0_258] : memref<2x8x32xf32, #tpu.memory_space<vmem>>, vector<1x8x32xf32>
    %509 = vector.shape_cast %508 : vector<1x8x32xf32> to vector<8x32xf32>
    %510 = arith.truncf %509 : vector<8x32xf32> to vector<8x32xbf16>
    %cst_259 = arith.constant dense<0.000000e+00> : vector<8x128xf32>
    %511 = tpu.matmul %510, %3, %cst_259 {dimension_numbers = #tpu.dot_dimension_numbers<[1], [0], [0], [1], [0, 0, 1, 1], [], []>} : vector<8x32xbf16>, vector<32x128xbf16>, vector<8x128xf32> -> vector<8x128xf32>
    %512 = arith.addf %507, %511 : vector<8x128xf32>
    %c0_260 = arith.constant 0 : index
    %c0_261 = arith.constant 0 : index
    %c0_262 = arith.constant 0 : index
    %513 = vector.load %arg8[%c0_260, %c0_261, %c0_262] : memref<2x8x32xf32, #tpu.memory_space<vmem>>, vector<1x8x32xf32>
    %514 = vector.shape_cast %513 : vector<1x8x32xf32> to vector<8x32xf32>
    %515 = vector.extract_strided_slice %512 {offsets = [0, 0], sizes = [8, 96], strides = [1, 1]} : vector<8x128xf32> to vector<8x96xf32>
    %516 = arith.negf %515 : vector<8x96xf32>
    %517 = math.exp %516 : vector<8x96xf32>
    %cst_263 = arith.constant 1.000000e+00 : f32
    %518 = vector.broadcast %cst_263 : f32 to vector<8x96xf32>
    %519 = arith.addf %518, %517 : vector<8x96xf32>
    %520 = arith.divf %518, %519 : vector<8x96xf32>
    %521 = vector.extract_strided_slice %520 {offsets = [0, 0], sizes = [8, 32], strides = [1, 1]} : vector<8x96xf32> to vector<8x32xf32>
    %522 = vector.extract_strided_slice %520 {offsets = [0, 32], sizes = [8, 32], strides = [1, 1]} : vector<8x96xf32> to vector<8x32xf32>
    %523 = vector.extract_strided_slice %520 {offsets = [0, 64], sizes = [8, 32], strides = [1, 1]} : vector<8x96xf32> to vector<8x32xf32>
    %524 = vector.extract_strided_slice %512 {offsets = [0, 96], sizes = [8, 32], strides = [1, 1]} : vector<8x128xf32> to vector<8x32xf32>
    %525 = math.tanh %524 : vector<8x32xf32>
    %526 = arith.mulf %522, %514 : vector<8x32xf32>
    %527 = arith.mulf %521, %525 : vector<8x32xf32>
    %528 = arith.addf %526, %527 : vector<8x32xf32>
    %529 = math.tanh %528 : vector<8x32xf32>
    %530 = arith.mulf %523, %529 : vector<8x32xf32>
    %c0_264 = arith.constant 0 : index
    %c0_265 = arith.constant 0 : index
    %c0_266 = arith.constant 0 : index
    %531 = vector.load %arg7[%c0_264, %c0_265, %c0_266] : memref<2x8x32xf32, #tpu.memory_space<vmem>>, vector<1x8x32xf32>
    %532 = vector.shape_cast %531 : vector<1x8x32xf32> to vector<8x32xf32>
    %533 = vector.shape_cast %530 : vector<8x32xf32> to vector<1x8x32xf32>
    tpu.vector_store %arg7[%c0_264, %c0_265, %c0_266], %533 {strides = array<i32>} : memref<2x8x32xf32, #tpu.memory_space<vmem>>, vector<1x8x32xf32>,
    %c0_267 = arith.constant 0 : index
    %c0_268 = arith.constant 0 : index
    %c0_269 = arith.constant 0 : index
    %534 = vector.load %arg8[%c0_267, %c0_268, %c0_269] : memref<2x8x32xf32, #tpu.memory_space<vmem>>, vector<1x8x32xf32>
    %535 = vector.shape_cast %534 : vector<1x8x32xf32> to vector<8x32xf32>
    %536 = vector.shape_cast %528 : vector<8x32xf32> to vector<1x8x32xf32>
    tpu.vector_store %arg8[%c0_267, %c0_268, %c0_269], %536 {strides = array<i32>} : memref<2x8x32xf32, #tpu.memory_space<vmem>>, vector<1x8x32xf32>,
    %c1_270 = arith.constant 1 : index
    %c0_271 = arith.constant 0 : index
    %c0_272 = arith.constant 0 : index
    %537 = vector.load %arg7[%c1_270, %c0_271, %c0_272] : memref<2x8x32xf32, #tpu.memory_space<vmem>>, vector<1x8x32xf32>
    %538 = vector.shape_cast %537 : vector<1x8x32xf32> to vector<8x32xf32>
    %539 = tpu.concatenate %530, %538 in 1 : vector<8x32xf32>, vector<8x32xf32> -> vector<8x64xf32>
    %540 = arith.truncf %539 : vector<8x64xf32> to vector<8x64xbf16>
    %cst_273 = arith.constant dense<0.000000e+00> : vector<8x128xf32>
    %541 = tpu.matmul %540, %5, %cst_273 {dimension_numbers = #tpu.dot_dimension_numbers<[1], [0], [0], [1], [0, 0, 1, 1], [], []>} : vector<8x64xbf16>, vector<64x128xbf16>, vector<8x128xf32> -> vector<8x128xf32>
    %542 = vector.broadcast %6 : vector<1x128xf32> to vector<8x128xf32>
    %543 = arith.addf %541, %542 : vector<8x128xf32>
    %c1_274 = arith.constant 1 : index
    %c0_275 = arith.constant 0 : index
    %c0_276 = arith.constant 0 : index
    %544 = vector.load %arg8[%c1_274, %c0_275, %c0_276] : memref<2x8x32xf32, #tpu.memory_space<vmem>>, vector<1x8x32xf32>
    %545 = vector.shape_cast %544 : vector<1x8x32xf32> to vector<8x32xf32>
    %546 = vector.extract_strided_slice %543 {offsets = [0, 0], sizes = [8, 96], strides = [1, 1]} : vector<8x128xf32> to vector<8x96xf32>
    %547 = arith.negf %546 : vector<8x96xf32>
    %548 = math.exp %547 : vector<8x96xf32>
    %cst_277 = arith.constant 1.000000e+00 : f32
    %549 = vector.broadcast %cst_277 : f32 to vector<8x96xf32>
    %550 = arith.addf %549, %548 : vector<8x96xf32>
    %551 = arith.divf %549, %550 : vector<8x96xf32>
    %552 = vector.extract_strided_slice %551 {offsets = [0, 0], sizes = [8, 32], strides = [1, 1]} : vector<8x96xf32> to vector<8x32xf32>
    %553 = vector.extract_strided_slice %551 {offsets = [0, 32], sizes = [8, 32], strides = [1, 1]} : vector<8x96xf32> to vector<8x32xf32>
    %554 = vector.extract_strided_slice %551 {offsets = [0, 64], sizes = [8, 32], strides = [1, 1]} : vector<8x96xf32> to vector<8x32xf32>
    %555 = vector.extract_strided_slice %543 {offsets = [0, 96], sizes = [8, 32], strides = [1, 1]} : vector<8x128xf32> to vector<8x32xf32>
    %556 = math.tanh %555 : vector<8x32xf32>
    %557 = arith.mulf %553, %545 : vector<8x32xf32>
    %558 = arith.mulf %552, %556 : vector<8x32xf32>
    %559 = arith.addf %557, %558 : vector<8x32xf32>
    %560 = math.tanh %559 : vector<8x32xf32>
    %561 = arith.mulf %554, %560 : vector<8x32xf32>
    %c1_278 = arith.constant 1 : index
    %c0_279 = arith.constant 0 : index
    %c0_280 = arith.constant 0 : index
    %562 = vector.load %arg7[%c1_278, %c0_279, %c0_280] : memref<2x8x32xf32, #tpu.memory_space<vmem>>, vector<1x8x32xf32>
    %563 = vector.shape_cast %562 : vector<1x8x32xf32> to vector<8x32xf32>
    %564 = vector.shape_cast %561 : vector<8x32xf32> to vector<1x8x32xf32>
    tpu.vector_store %arg7[%c1_278, %c0_279, %c0_280], %564 {strides = array<i32>} : memref<2x8x32xf32, #tpu.memory_space<vmem>>, vector<1x8x32xf32>,
    %c1_281 = arith.constant 1 : index
    %c0_282 = arith.constant 0 : index
    %c0_283 = arith.constant 0 : index
    %565 = vector.load %arg8[%c1_281, %c0_282, %c0_283] : memref<2x8x32xf32, #tpu.memory_space<vmem>>, vector<1x8x32xf32>
    %566 = vector.shape_cast %565 : vector<1x8x32xf32> to vector<8x32xf32>
    %567 = vector.shape_cast %559 : vector<8x32xf32> to vector<1x8x32xf32>
    tpu.vector_store %arg8[%c1_281, %c0_282, %c0_283], %567 {strides = array<i32>} : memref<2x8x32xf32, #tpu.memory_space<vmem>>, vector<1x8x32xf32>,
    %568 = vector.broadcast %505 : i32 to vector<8x1xi32>
    %569 = arith.cmpi eq, %4, %568 : vector<8x1xi32>
    %570 = vector.shape_cast %569 : vector<8x1xi1> to vector<8x1xi1>
    %571 = vector.broadcast %570 : vector<8x1xi1> to vector<8x32xi1>
    %c0_284 = arith.constant 0 : index
    %c0_285 = arith.constant 0 : index
    %572 = vector.load %arg6[%c0_284, %c0_285] : memref<8x32xf32, #tpu.memory_space<vmem>>, vector<8x32xf32>
    %573 = arith.select %571, %561, %572 : vector<8x32xi1>, vector<8x32xf32>
    %c0_286 = arith.constant 0 : index
    %c0_287 = arith.constant 0 : index
    %574 = vector.load %arg6[%c0_286, %c0_287] : memref<8x32xf32, #tpu.memory_space<vmem>>, vector<8x32xf32>
    tpu.vector_store %arg6[%c0_286, %c0_287], %573 {strides = array<i32>} : memref<8x32xf32, #tpu.memory_space<vmem>>, vector<8x32xf32>,
    return
  }
  func.func @transform_0(%arg0: i32) -> (i32, i32, i32) {
    %c0_i32 = arith.constant 0 : i32
    %c0_i32_0 = arith.constant 0 : i32
    %c0_i32_1 = arith.constant 0 : i32
    return %arg0, %c0_i32, %c0_i32_0 : i32, i32, i32
  }
  func.func @transform_1(%arg0: i32) -> (i32, i32) {
    %c0_i32 = arith.constant 0 : i32
    %c0_i32_0 = arith.constant 0 : i32
    %c0_i32_1 = arith.constant 0 : i32
    return %c0_i32, %c0_i32_0 : i32, i32
  }
  func.func @transform_2(%arg0: i32) -> (i32, i32) {
    %c0_i32 = arith.constant 0 : i32
    %c0_i32_0 = arith.constant 0 : i32
    %c0_i32_1 = arith.constant 0 : i32
    return %c0_i32, %c0_i32_0 : i32, i32
  }
  func.func @transform_3(%arg0: i32) -> (i32, i32) {
    %c0_i32 = arith.constant 0 : i32
    %c0_i32_0 = arith.constant 0 : i32
    %c0_i32_1 = arith.constant 0 : i32
    return %c0_i32, %c0_i32_0 : i32, i32
  }
  func.func @transform_4(%arg0: i32) -> (i32, i32) {
    %c0_i32 = arith.constant 0 : i32
    %c0_i32_0 = arith.constant 0 : i32
    %c0_i32_1 = arith.constant 0 : i32
    return %c0_i32, %c0_i32_0 : i32, i32
  }
  func.func @transform_5(%arg0: i32) -> (i32, i32) {
    %c0_i32 = arith.constant 0 : i32
    %c0_i32_0 = arith.constant 0 : i32
    %c0_i32_1 = arith.constant 0 : i32
    return %c0_i32, %c0_i32_0 : i32, i32
  }
}

</mosaic_0001>

<llo_original>
// kernel: lstm_encoder_forward.1
$region0: #{lstm_encoder_forward.1}
  #allocation0 [shape = 'u32[]', space=smem, size = 0x4, offset = 0x4, fixed_abs, tag = 'smem constant byte address 0x4 - core index']
  #allocation1 [shape = 'u32[144,128]{1,0:T(1,128)}', space=vmem, size = 0x12000, scoped, tag = 'internal scratch']
  #allocation2 [shape = 'f32[2,8,32]{2,1,0:T(8,128)}', space=vmem, size = 0x2000, scoped, tag = 'scratch operand']
  #allocation3 [shape = 'f32[2,8,32]{2,1,0:T(8,128)}', space=vmem, size = 0x2000, scoped, tag = 'scratch operand']
  %s0 = inlined_call_operand.vmem [shape: f32[8,8,128], index: 0, kind: input, shape index: {}]
  %s1 = inlined_call_operand.vmem [shape: s32[8,1], index: 1, kind: input, shape index: {}]
  %s2 = inlined_call_operand.vmem [shape: bf16[32,128], index: 2, kind: input, shape index: {}]
  %s3 = inlined_call_operand.vmem [shape: bf16[64,128], index: 3, kind: input, shape index: {}]
  %s4 = inlined_call_operand.vmem [shape: f32[1,128], index: 4, kind: input, shape index: {}]
  %s5 = inlined_call_operand.vmem [shape: f32[8,32], index: 5, kind: output, shape index: {}]
  %s6 = sld [smem:[#allocation0]]
  $region34: #{lstm_encoder_forward.1} parent=0
    _
  %s8 = ssub.s32 1, %s6
  %s9 = scalar_select 0, %s8, %s6
  // Predicated region
  $region2: #{lstm_encoder_forward.1} parent=0 // pred_check
    _
  $region3: #{lstm_encoder_forward.1} parent=0 // pred_check_branch
    %11 = sbr.rel (0) target = $region5
  $region4: #{lstm_encoder_forward.1} parent=0 // pred_region
    _
  $region5: #{lstm_encoder_forward.1} parent=0 // pred_fallthru
    _
  // Predicated region
  $region6: #{lstm_encoder_forward.1} parent=0 // pred_check
    _
  $region7: #{lstm_encoder_forward.1} parent=0 // pred_check_branch
    %13 = sbr.rel (0) target = $region9
  $region8: #{lstm_encoder_forward.1} parent=0 // pred_region
    _
  $region9: #{lstm_encoder_forward.1} parent=0 // pred_fallthru
    _
  // Predicated region
  $region10: #{lstm_encoder_forward.1} parent=0 // pred_check
    _
  $region11: #{lstm_encoder_forward.1} parent=0 // pred_check_branch
    %15 = sbr.rel (0) target = $region13
  $region12: #{lstm_encoder_forward.1} parent=0 // pred_region
    _
  $region13: #{lstm_encoder_forward.1} parent=0 // pred_fallthru
    _
  // Predicated region
  $region14: #{lstm_encoder_forward.1} parent=0 // pred_check
    _
  $region15: #{lstm_encoder_forward.1} parent=0 // pred_check_branch
    %17 = sbr.rel (0) target = $region17
  $region16: #{lstm_encoder_forward.1} parent=0 // pred_region
    _
  $region17: #{lstm_encoder_forward.1} parent=0 // pred_fallthru
    _
  // Predicated region
  $region18: #{lstm_encoder_forward.1} parent=0 // pred_check
    _
  $region19: #{lstm_encoder_forward.1} parent=0 // pred_check_branch
    %19 = sbr.rel (0) target = $region21
  $region20: #{lstm_encoder_forward.1} parent=0 // pred_region
    _
  $region21: #{lstm_encoder_forward.1} parent=0 // pred_fallthru
    _
  %p21 = scmp.eq.s32.totalorder 0, 0
  // Predicated region
  $region22: #{lstm_encoder_forward.1} parent=0 // pred_check
    %p22 = pneg %p21
  $region23: #{lstm_encoder_forward.1} parent=0 // pred_check_branch
    %24 = sbr.rel (%p22) target = $region25
  $region24: #{lstm_encoder_forward.1} parent=0 // pred_region
    %vm25 = vcmask 261120
    %26 = vst.msk [vmem:[#allocation2] sm:$0xff] %vm25, 0.0
    %27 = vst.msk [vmem:[#allocation2 + $0x8] sm:$0xff] %vm25, 0.0
    %28 = vst.msk [vmem:[#allocation3] sm:$0xff] %vm25, 0.0
    %29 = vst.msk [vmem:[#allocation3 + $0x8] sm:$0xff] %vm25, 0.0
    %30 = vst.msk [vmem:[%s5] sm:$0xff] %vm25, 0.0
  $region25: #{lstm_encoder_forward.1} parent=0 // pred_fallthru
    _
  %v31 = vld [vmem:[%s2] sm:$0xf]
  %v32 = vld [vmem:[%s2 + $0x4] sm:$0xf]
  %v33 = vld [vmem:[%s2 + $0x8] sm:$0xf]
  %v34 = vld [vmem:[%s2 + $0xc] sm:$0xf]
  %v35 = vld [vmem:[%s1] sm:$0xff]
  %v36 = vld [vmem:[%s3] sm:$0xf]
  %v37 = vld [vmem:[%s3 + $0x4] sm:$0xf]
  %v38 = vld [vmem:[%s3 + $0x8] sm:$0xf]
  %v39 = vld [vmem:[%s3 + $0xc] sm:$0xf]
  %v40 = vld [vmem:[%s3 + $0x10] sm:$0xf]
  %v41 = vld [vmem:[%s3 + $0x14] sm:$0xf]
  %v42 = vld [vmem:[%s3 + $0x18] sm:$0xf]
  %v43 = vld [vmem:[%s3 + $0x1c] sm:$0xf]
  %v44 = vld [vmem:[%s4] sm:$0x1]
  %s45 = smul.u32 0, 8
  %v46 = vld [vmem:[%s0] sm:$0xff]
  %v47 = vld [vmem:[#allocation2] sm:$0xff]
  %v48 = vpack.c.bf16 %v47, %v47
  %v53 = vunpack.c.l.b16 %v31
  %v54 = vunpack.c.l.b16 %v32
  %v55 = vunpack.c.l.b16 %v33
  %v56 = vunpack.c.l.b16 %v34
  %v57 = vpack.c.b16 %v54, %v53
  %v58 = vpack.c.b16 %v56, %v55
  %vm61 = vcmask 261120
  %v63 = vsel %vm61, %v48, 0
  %65 = vmatprep.subr.bf16.mxu0 0
  %66 = vmatpush1.bf16.msra.mxu0 %v57
  %67 = vmatprep.subr.bf16.mxu0 0
  %68 = vmatpush1.bf16.msra.mxu0 %v58
  %69 = vmatprep.subr.bf16.mxu0 0
  %70 = vmatpush1.bf16.msra.mxu0 0
  %71 = vmatprep.subr.bf16.mxu0 0
  %72 = vmatpush1.bf16.msra.mxu0 0
  %73 = vmatprep.subr.bf16.mxu0 0
  %74 = vmatpush1.bf16.msra.mxu0 0
  %75 = vmatprep.subr.bf16.mxu0 0
  %76 = vmatpush1.bf16.msra.mxu0 0
  %77 = vmatprep.subr.bf16.mxu0 0
  %78 = vmatpush1.bf16.msra.mxu0 0
  %79 = vmatprep.subr.bf16.mxu0 0
  %80 = vmatpush1.bf16.msra.mxu0 0
  %81 = vmatprep.subr.bf16.mxu0 0
  %82 = vmatpush1.bf16.msra.mxu0 0
  %83 = vmatprep.subr.bf16.mxu0 0
  %84 = vmatpush1.bf16.msra.mxu0 0
  %85 = vmatprep.subr.bf16.mxu0 0
  %86 = vmatpush1.bf16.msra.mxu0 0
  %87 = vmatprep.subr.bf16.mxu0 0
  %88 = vmatpush1.bf16.msra.mxu0 0
  %89 = vmatprep.subr.bf16.mxu0 0
  %90 = vmatpush1.bf16.msra.mxu0 0
  %91 = vmatprep.subr.bf16.mxu0 0
  %92 = vmatpush1.bf16.msra.mxu0 0
  %93 = vmatprep.subr.bf16.mxu0 0
  %94 = vmatpush1.bf16.msra.mxu0 0
  %95 = vmatprep.subr.bf16.mxu0 0
  %96 = vmatpush1.bf16.msra.mxu0 0
  %97 = vmatprep.mubr.bf16.mxu0 0
  %98 = vmatmul.mubr.bf16.gmra.mrb[0].mxu0 %v63
  %v99 = vpop.f32.mrb[0].mxu0
  %v100 = vadd.f32 0.0, %v99
  %v101 = vpop.f32.mrb[0].mxu0
  %v102 = vpop.f32.mrb[0].mxu0
  %v103 = vpop.f32.mrb[0].mxu0
  %104 = vdwg.mxu0
  %v105 = vadd.f32 %v46, %v100
  %v106 = vld [vmem:[#allocation3] sm:$0xff]
  %v107 = vxor.u32 %v105, 2147483648
  %v108 = vmul.f32 %v107, 1.442695
  %v109 = vpow.pop %v108
  %v110 = vadd.f32 %v109, 1.0
  %v111 = vrcp.pop %v110
  %v112 = vmul.f32 1.0, %v111
  %v113 = vtanh.pop %v105
  %115 = vrot.lane.b32.xlu0 %v106, 32
  %v116 = vpop.permute.xlu0 %115
  %v118 = vmul.f32 %v112, %v116
  %120 = vrot.lane.b32.xlu0 %v113, 32
  %v121 = vpop.permute.xlu0 %120
  %v123 = vmul.f32 %v112, %v121
  %125 = vrot.lane.b32.xlu0 %v123, 32
  %v126 = vpop.permute.xlu0 %125
  %v128 = vadd.f32 %v118, %v126
  %v129 = vtanh.pop %v128
  %131 = vrot.lane.b32.xlu0 %v129, 32
  %v132 = vpop.permute.xlu0 %131
  %v134 = vmul.f32 %v112, %v132
  %136 = vrot.lane.b32.xlu0 %v134, 64
  %v137 = vpop.permute.xlu0 %136
  %139 = vst.msk [vmem:[#allocation2] sm:$0xff] %vm61, %v137
  %141 = vrot.lane.b32.xlu0 %v128, 96
  %v142 = vpop.permute.xlu0 %141
  %144 = vst.msk [vmem:[#allocation3] sm:$0xff] %vm61, %v142
  %s145 = scalar_lea.vmem [#allocation2], 8
  %v146 = vld [vmem:[%s145] sm:$0xff]
  %148 = vrot.lane.b32.xlu0 %v146, 32
  %v149 = vpop.permute.xlu0 %148
  %v151 = vsel %vm61, %v137, %v149
  %v152 = vpack.c.bf16 %v151, %v151
  %v154 = vlaneseq
  %v155 = vshrl.u32 %v154, 7
  %v156 = vsub.s32 0, %v155
  %v157 = vrot.slane %v44, %v156
  %v167 = vunpack.c.l.b16 %v36
  %v168 = vunpack.c.l.b16 %v37
  %v169 = vunpack.c.l.b16 %v38
  %v170 = vunpack.c.l.b16 %v39
  %v171 = vunpack.c.l.b16 %v40
  %v172 = vunpack.c.l.b16 %v41
  %v173 = vunpack.c.l.b16 %v42
  %v174 = vunpack.c.l.b16 %v43
  %v175 = vpack.c.b16 %v168, %v167
  %v176 = vpack.c.b16 %v170, %v169
  %v177 = vpack.c.b16 %v172, %v171
  %v178 = vpack.c.b16 %v174, %v173
  %vm183 = vcmask 523264
  %v185 = vsel %vm183, %v152, 0
  %187 = vmatprep.subr.bf16.mxu0 0
  %188 = vmatpush1.bf16.msra.mxu0 %v175
  %189 = vmatprep.subr.bf16.mxu0 0
  %190 = vmatpush1.bf16.msra.mxu0 %v176
  %191 = vmatprep.subr.bf16.mxu0 0
  %192 = vmatpush1.bf16.msra.mxu0 %v177
  %193 = vmatprep.subr.bf16.mxu0 0
  %194 = vmatpush1.bf16.msra.mxu0 %v178
  %195 = vmatprep.subr.bf16.mxu0 0
  %196 = vmatpush1.bf16.msra.mxu0 0
  %197 = vmatprep.subr.bf16.mxu0 0
  %198 = vmatpush1.bf16.msra.mxu0 0
  %199 = vmatprep.subr.bf16.mxu0 0
  %200 = vmatpush1.bf16.msra.mxu0 0
  %201 = vmatprep.subr.bf16.mxu0 0
  %202 = vmatpush1.bf16.msra.mxu0 0
  %203 = vmatprep.subr.bf16.mxu0 0
  %204 = vmatpush1.bf16.msra.mxu0 0
  %205 = vmatprep.subr.bf16.mxu0 0
  %206 = vmatpush1.bf16.msra.mxu0 0
  %207 = vmatprep.subr.bf16.mxu0 0
  %208 = vmatpush1.bf16.msra.mxu0 0
  %209 = vmatprep.subr.bf16.mxu0 0
  %210 = vmatpush1.bf16.msra.mxu0 0
  %211 = vmatprep.subr.bf16.mxu0 0
  %212 = vmatpush1.bf16.msra.mxu0 0
  %213 = vmatprep.subr.bf16.mxu0 0
  %214 = vmatpush1.bf16.msra.mxu0 0
  %215 = vmatprep.subr.bf16.mxu0 0
  %216 = vmatpush1.bf16.msra.mxu0 0
  %217 = vmatprep.subr.bf16.mxu0 0
  %218 = vmatpush1.bf16.msra.mxu0 0
  %219 = vmatprep.mubr.bf16.mxu0 0
  %220 = vmatmul.mubr.bf16.gmra.mrb[0].mxu0 %v185
  %v221 = vpop.f32.mrb[0].mxu0
  %v222 = vadd.f32 %v157, %v221
  %v223 = vpop.f32.mrb[0].mxu0
  %v224 = vpop.f32.mrb[0].mxu0
  %v225 = vpop.f32.mrb[0].mxu0
  %226 = vdwg.mxu0
  %s227 = scalar_lea.vmem [#allocation3], 8
  %v228 = vld [vmem:[%s227] sm:$0xff]
  %v229 = vxor.u32 %v222, 2147483648
  %v230 = vmul.f32 %v229, 1.442695
  %v231 = vpow.pop %v230
  %v232 = vadd.f32 %v231, 1.0
  %v233 = vrcp.pop %v232
  %v234 = vmul.f32 1.0, %v233
  %v235 = vtanh.pop %v222
  %237 = vrot.lane.b32.xlu0 %v228, 32
  %v238 = vpop.permute.xlu0 %237
  %v240 = vmul.f32 %v234, %v238
  %242 = vrot.lane.b32.xlu0 %v235, 32
  %v243 = vpop.permute.xlu0 %242
  %v245 = vmul.f32 %v234, %v243
  %247 = vrot.lane.b32.xlu0 %v245, 32
  %v248 = vpop.permute.xlu0 %247
  %v250 = vadd.f32 %v240, %v248
  %v251 = vtanh.pop %v250
  %253 = vrot.lane.b32.xlu0 %v251, 32
  %v254 = vpop.permute.xlu0 %253
  %v256 = vmul.f32 %v234, %v254
  %258 = vrot.lane.b32.xlu0 %v256, 64
  %v259 = vpop.permute.xlu0 %258
  %261 = vst.msk [vmem:[%s145] sm:$0xff] %vm61, %v259
  %263 = vrot.lane.b32.xlu0 %v250, 96
  %v264 = vpop.permute.xlu0 %263
  %266 = vst.msk [vmem:[%s227] sm:$0xff] %vm61, %v264
  %v267 = vstv %s45
  %vm268 = vcmp.eq.s32.totalorder %v35, %v267
  %v269 = vsel %vm268, 1, 0
  %270 = vset.pattern.permute.xlu0 0
  %271 = vperm.xlu0 %270, %v269
  %v272 = vpop.permute.xlu0 %271
  %vm273 = vcmp.eq.s32.totalorder %v272, 1
  %v274 = vld [vmem:[%s5] sm:$0xff]
  %276 = vrot.lane.b32.xlu0 %v274, 64
  %v277 = vpop.permute.xlu0 %276
  %v279 = vsel %vm273, %v256, %v277
  %281 = vrot.lane.b32.xlu0 %v279, 64
  %v282 = vpop.permute.xlu0 %281
  %284 = vst.msk [vmem:[%s5] sm:$0xff] %vm61, %v282
  %s285 = sadd.s32 %s45, 1
  %s286 = scalar_lea.vmem %s0, 8
  %v287 = vld [vmem:[%s286] sm:$0xff]
  %v288 = vld [vmem:[#allocation2] sm:$0xff]
  %v289 = vpack.c.bf16 %v288, %v288
  %v291 = vsel %vm61, %v289, 0
  %293 = vmatprep.subr.bf16.mxu0 0
  %294 = vmatpush1.bf16.msra.mxu0 %v57
  %295 = vmatprep.subr.bf16.mxu0 0
  %296 = vmatpush1.bf16.msra.mxu0 %v58
  %297 = vmatprep.subr.bf16.mxu0 0
  %298 = vmatpush1.bf16.msra.mxu0 0
  %299 = vmatprep.subr.bf16.mxu0 0
  %300 = vmatpush1.bf16.msra.mxu0 0
  %301 = vmatprep.subr.bf16.mxu0 0
  %302 = vmatpush1.bf16.msra.mxu0 0
  %303 = vmatprep.subr.bf16.mxu0 0
  %304 = vmatpush1.bf16.msra.mxu0 0
  %305 = vmatprep.subr.bf16.mxu0 0
  %306 = vmatpush1.bf16.msra.mxu0 0
  %307 = vmatprep.subr.bf16.mxu0 0
  %308 = vmatpush1.bf16.msra.mxu0 0
  %309 = vmatprep.subr.bf16.mxu0 0
  %310 = vmatpush1.bf16.msra.mxu0 0
  %311 = vmatprep.subr.bf16.mxu0 0
  %312 = vmatpush1.bf16.msra.mxu0 0
  %313 = vmatprep.subr.bf16.mxu0 0
  %314 = vmatpush1.bf16.msra.mxu0 0
  %315 = vmatprep.subr.bf16.mxu0 0
  %316 = vmatpush1.bf16.msra.mxu0 0
  %317 = vmatprep.subr.bf16.mxu0 0
  %318 = vmatpush1.bf16.msra.mxu0 0
  %319 = vmatprep.subr.bf16.mxu0 0
  %320 = vmatpush1.bf16.msra.mxu0 0
  %321 = vmatprep.subr.bf16.mxu0 0
  %322 = vmatpush1.bf16.msra.mxu0 0
  %323 = vmatprep.subr.bf16.mxu0 0
  %324 = vmatpush1.bf16.msra.mxu0 0
  %325 = vmatprep.mubr.bf16.mxu0 0
  %326 = vmatmul.mubr.bf16.gmra.mrb[0].mxu0 %v291
  %v327 = vpop.f32.mrb[0].mxu0
  %v328 = vadd.f32 0.0, %v327
  %v329 = vpop.f32.mrb[0].mxu0
  %v330 = vpop.f32.mrb[0].mxu0
  %v331 = vpop.f32.mrb[0].mxu0
  %332 = vdwg.mxu0
  %v333 = vadd.f32 %v287, %v328
  %v334 = vld [vmem:[#allocation3] sm:$0xff]
  %v335 = vxor.u32 %v333, 2147483648
  %v336 = vmul.f32 %v335, 1.442695
  %v337 = vpow.pop %v336
  %v338 = vadd.f32 %v337, 1.0
  %v339 = vrcp.pop %v338
  %v340 = vmul.f32 1.0, %v339
  %v341 = vtanh.pop %v333
  %343 = vrot.lane.b32.xlu0 %v334, 32
  %v344 = vpop.permute.xlu0 %343
  %v346 = vmul.f32 %v340, %v344
  %348 = vrot.lane.b32.xlu0 %v341, 32
  %v349 = vpop.permute.xlu0 %348
  %v351 = vmul.f32 %v340, %v349
  %353 = vrot.lane.b32.xlu0 %v351, 32
  %v354 = vpop.permute.xlu0 %353
  %v356 = vadd.f32 %v346, %v354
  %v357 = vtanh.pop %v356
  %359 = vrot.lane.b32.xlu0 %v357, 32
  %v360 = vpop.permute.xlu0 %359
  %v362 = vmul.f32 %v340, %v360
  %364 = vrot.lane.b32.xlu0 %v362, 64
  %v365 = vpop.permute.xlu0 %364
  %367 = vst.msk [vmem:[#allocation2] sm:$0xff] %vm61, %v365
  %369 = vrot.lane.b32.xlu0 %v356, 96
  %v370 = vpop.permute.xlu0 %369
  %372 = vst.msk [vmem:[#allocation3] sm:$0xff] %vm61, %v370
  %v373 = vld [vmem:[%s145] sm:$0xff]
  %375 = vrot.lane.b32.xlu0 %v373, 32
  %v376 = vpop.permute.xlu0 %375
  %v378 = vsel %vm61, %v365, %v376
  %v379 = vpack.c.bf16 %v378, %v378
  %v381 = vsel %vm183, %v379, 0
  %383 = vmatprep.subr.bf16.mxu0 0
  %384 = vmatpush1.bf16.msra.mxu0 %v175
  %385 = vmatprep.subr.bf16.mxu0 0
  %386 = vmatpush1.bf16.msra.mxu0 %v176
  %387 = vmatprep.subr.bf16.mxu0 0
  %388 = vmatpush1.bf16.msra.mxu0 %v177
  %389 = vmatprep.subr.bf16.mxu0 0
  %390 = vmatpush1.bf16.msra.mxu0 %v178
  %391 = vmatprep.subr.bf16.mxu0 0
  %392 = vmatpush1.bf16.msra.mxu0 0
  %393 = vmatprep.subr.bf16.mxu0 0
  %394 = vmatpush1.bf16.msra.mxu0 0
  %395 = vmatprep.subr.bf16.mxu0 0
  %396 = vmatpush1.bf16.msra.mxu0 0
  %397 = vmatprep.subr.bf16.mxu0 0
  %398 = vmatpush1.bf16.msra.mxu0 0
  %399 = vmatprep.subr.bf16.mxu0 0
  %400 = vmatpush1.bf16.msra.mxu0 0
  %401 = vmatprep.subr.bf16.mxu0 0
  %402 = vmatpush1.bf16.msra.mxu0 0
  %403 = vmatprep.subr.bf16.mxu0 0
  %404 = vmatpush1.bf16.msra.mxu0 0
  %405 = vmatprep.subr.bf16.mxu0 0
  %406 = vmatpush1.bf16.msra.mxu0 0
  %407 = vmatprep.subr.bf16.mxu0 0
  %408 = vmatpush1.bf16.msra.mxu0 0
  %409 = vmatprep.subr.bf16.mxu0 0
  %410 = vmatpush1.bf16.msra.mxu0 0
  %411 = vmatprep.subr.bf16.mxu0 0
  %412 = vmatpush1.bf16.msra.mxu0 0
  %413 = vmatprep.subr.bf16.mxu0 0
  %414 = vmatpush1.bf16.msra.mxu0 0
  %415 = vmatprep.mubr.bf16.mxu0 0
  %416 = vmatmul.mubr.bf16.gmra.mrb[0].mxu0 %v381
  %v417 = vpop.f32.mrb[0].mxu0
  %v418 = vadd.f32 %v157, %v417
  %v419 = vpop.f32.mrb[0].mxu0
  %v420 = vpop.f32.mrb[0].mxu0
  %v421 = vpop.f32.mrb[0].mxu0
  %422 = vdwg.mxu0
  %v423 = vld [vmem:[%s227] sm:$0xff]
  %v424 = vxor.u32 %v418, 2147483648
  %v425 = vmul.f32 %v424, 1.442695
  %v426 = vpow.pop %v425
  %v427 = vadd.f32 %v426, 1.0
  %v428 = vrcp.pop %v427
  %v429 = vmul.f32 1.0, %v428
  %v430 = vtanh.pop %v418
  %432 = vrot.lane.b32.xlu0 %v423, 32
  %v433 = vpop.permute.xlu0 %432
  %v435 = vmul.f32 %v429, %v433
  %437 = vrot.lane.b32.xlu0 %v430, 32
  %v438 = vpop.permute.xlu0 %437
  %v440 = vmul.f32 %v429, %v438
  %442 = vrot.lane.b32.xlu0 %v440, 32
  %v443 = vpop.permute.xlu0 %442
  %v445 = vadd.f32 %v435, %v443
  %v446 = vtanh.pop %v445
  %448 = vrot.lane.b32.xlu0 %v446, 32
  %v449 = vpop.permute.xlu0 %448
  %v451 = vmul.f32 %v429, %v449
  %453 = vrot.lane.b32.xlu0 %v451, 64
  %v454 = vpop.permute.xlu0 %453
  %456 = vst.msk [vmem:[%s145] sm:$0xff] %vm61, %v454
  %458 = vrot.lane.b32.xlu0 %v445, 96
  %v459 = vpop.permute.xlu0 %458
  %461 = vst.msk [vmem:[%s227] sm:$0xff] %vm61, %v459
  %v462 = vstv %s285
  %vm463 = vcmp.eq.s32.totalorder %v35, %v462
  %v464 = vsel %vm463, 1, 0
  %465 = vset.pattern.permute.xlu0 0
  %466 = vperm.xlu0 %465, %v464
  %v467 = vpop.permute.xlu0 %466
  %vm468 = vcmp.eq.s32.totalorder %v467, 1
  %v469 = vld [vmem:[%s5] sm:$0xff]
  %471 = vrot.lane.b32.xlu0 %v469, 64
  %v472 = vpop.permute.xlu0 %471
  %v474 = vsel %vm468, %v451, %v472
  %476 = vrot.lane.b32.xlu0 %v474, 64
  %v477 = vpop.permute.xlu0 %476
  %479 = vst.msk [vmem:[%s5] sm:$0xff] %vm61, %v477
  %s480 = sadd.s32 %s45, 2
  %s481 = scalar_lea.vmem %s0, 16
  %v482 = vld [vmem:[%s481] sm:$0xff]
  %v483 = vld [vmem:[#allocation2] sm:$0xff]
  %v484 = vpack.c.bf16 %v483, %v483
  %v486 = vsel %vm61, %v484, 0
  %488 = vmatprep.subr.bf16.mxu0 0
  %489 = vmatpush1.bf16.msra.mxu0 %v57
  %490 = vmatprep.subr.bf16.mxu0 0
  %491 = vmatpush1.bf16.msra.mxu0 %v58
  %492 = vmatprep.subr.bf16.mxu0 0
  %493 = vmatpush1.bf16.msra.mxu0 0
  %494 = vmatprep.subr.bf16.mxu0 0
  %495 = vmatpush1.bf16.msra.mxu0 0
  %496 = vmatprep.subr.bf16.mxu0 0
  %497 = vmatpush1.bf16.msra.mxu0 0
  %498 = vmatprep.subr.bf16.mxu0 0
  %499 = vmatpush1.bf16.msra.mxu0 0
  %500 = vmatprep.subr.bf16.mxu0 0
  %501 = vmatpush1.bf16.msra.mxu0 0
  %502 = vmatprep.subr.bf16.mxu0 0
  %503 = vmatpush1.bf16.msra.mxu0 0
  %504 = vmatprep.subr.bf16.mxu0 0
  %505 = vmatpush1.bf16.msra.mxu0 0
  %506 = vmatprep.subr.bf16.mxu0 0
  %507 = vmatpush1.bf16.msra.mxu0 0
  %508 = vmatprep.subr.bf16.mxu0 0
  %509 = vmatpush1.bf16.msra.mxu0 0
  %510 = vmatprep.subr.bf16.mxu0 0
  %511 = vmatpush1.bf16.msra.mxu0 0
  %512 = vmatprep.subr.bf16.mxu0 0
  %513 = vmatpush1.bf16.msra.mxu0 0
  %514 = vmatprep.subr.bf16.mxu0 0
  %515 = vmatpush1.bf16.msra.mxu0 0
  %516 = vmatprep.subr.bf16.mxu0 0
  %517 = vmatpush1.bf16.msra.mxu0 0
  %518 = vmatprep.subr.bf16.mxu0 0
  %519 = vmatpush1.bf16.msra.mxu0 0
  %520 = vmatprep.mubr.bf16.mxu0 0
  %521 = vmatmul.mubr.bf16.gmra.mrb[0].mxu0 %v486
  %v522 = vpop.f32.mrb[0].mxu0
  %v523 = vadd.f32 0.0, %v522
  %v524 = vpop.f32.mrb[0].mxu0
  %v525 = vpop.f32.mrb[0].mxu0
  %v526 = vpop.f32.mrb[0].mxu0
  %527 = vdwg.mxu0
  %v528 = vadd.f32 %v482, %v523
  %v529 = vld [vmem:[#allocation3] sm:$0xff]
  %v530 = vxor.u32 %v528, 2147483648
  %v531 = vmul.f32 %v530, 1.442695
  %v532 = vpow.pop %v531
  %v533 = vadd.f32 %v532, 1.0
  %v534 = vrcp.pop %v533
  %v535 = vmul.f32 1.0, %v534
  %v536 = vtanh.pop %v528
  %538 = vrot.lane.b32.xlu0 %v529, 32
  %v539 = vpop.permute.xlu0 %538
  %v541 = vmul.f32 %v535, %v539
  %543 = vrot.lane.b32.xlu0 %v536, 32
  %v544 = vpop.permute.xlu0 %543
  %v546 = vmul.f32 %v535, %v544
  %548 = vrot.lane.b32.xlu0 %v546, 32
  %v549 = vpop.permute.xlu0 %548
  %v551 = vadd.f32 %v541, %v549
  %v552 = vtanh.pop %v551
  %554 = vrot.lane.b32.xlu0 %v552, 32
  %v555 = vpop.permute.xlu0 %554
  %v557 = vmul.f32 %v535, %v555
  %559 = vrot.lane.b32.xlu0 %v557, 64
  %v560 = vpop.permute.xlu0 %559
  %562 = vst.msk [vmem:[#allocation2] sm:$0xff] %vm61, %v560
  %564 = vrot.lane.b32.xlu0 %v551, 96
  %v565 = vpop.permute.xlu0 %564
  %567 = vst.msk [vmem:[#allocation3] sm:$0xff] %vm61, %v565
  %v568 = vld [vmem:[%s145] sm:$0xff]
  %570 = vrot.lane.b32.xlu0 %v568, 32
  %v571 = vpop.permute.xlu0 %570
  %v573 = vsel %vm61, %v560, %v571
  %v574 = vpack.c.bf16 %v573, %v573
  %v576 = vsel %vm183, %v574, 0
  %578 = vmatprep.subr.bf16.mxu0 0
  %579 = vmatpush1.bf16.msra.mxu0 %v175
  %580 = vmatprep.subr.bf16.mxu0 0
  %581 = vmatpush1.bf16.msra.mxu0 %v176
  %582 = vmatprep.subr.bf16.mxu0 0
  %583 = vmatpush1.bf16.msra.mxu0 %v177
  %584 = vmatprep.subr.bf16.mxu0 0
  %585 = vmatpush1.bf16.msra.mxu0 %v178
  %586 = vmatprep.subr.bf16.mxu0 0
  %587 = vmatpush1.bf16.msra.mxu0 0
  %588 = vmatprep.subr.bf16.mxu0 0
  %589 = vmatpush1.bf16.msra.mxu0 0
  %590 = vmatprep.subr.bf16.mxu0 0
  %591 = vmatpush1.bf16.msra.mxu0 0
  %592 = vmatprep.subr.bf16.mxu0 0
  %593 = vmatpush1.bf16.msra.mxu0 0
  %594 = vmatprep.subr.bf16.mxu0 0
  %595 = vmatpush1.bf16.msra.mxu0 0
  %596 = vmatprep.subr.bf16.mxu0 0
  %597 = vmatpush1.bf16.msra.mxu0 0
  %598 = vmatprep.subr.bf16.mxu0 0
  %599 = vmatpush1.bf16.msra.mxu0 0
  %600 = vmatprep.subr.bf16.mxu0 0
  %601 = vmatpush1.bf16.msra.mxu0 0
  %602 = vmatprep.subr.bf16.mxu0 0
  %603 = vmatpush1.bf16.msra.mxu0 0
  %604 = vmatprep.subr.bf16.mxu0 0
  %605 = vmatpush1.bf16.msra.mxu0 0
  %606 = vmatprep.subr.bf16.mxu0 0
  %607 = vmatpush1.bf16.msra.mxu0 0
  %608 = vmatprep.subr.bf16.mxu0 0
  %609 = vmatpush1.bf16.msra.mxu0 0
  %610 = vmatprep.mubr.bf16.mxu0 0
  %611 = vmatmul.mubr.bf16.gmra.mrb[0].mxu0 %v576
  %v612 = vpop.f32.mrb[0].mxu0
  %v613 = vadd.f32 %v157, %v612
  %v614 = vpop.f32.mrb[0].mxu0
  %v615 = vpop.f32.mrb[0].mxu0
  %v616 = vpop.f32.mrb[0].mxu0
  %617 = vdwg.mxu0
  %v618 = vld [vmem:[%s227] sm:$0xff]
  %v619 = vxor.u32 %v613, 2147483648
  %v620 = vmul.f32 %v619, 1.442695
  %v621 = vpow.pop %v620
  %v622 = vadd.f32 %v621, 1.0
  %v623 = vrcp.pop %v622
  %v624 = vmul.f32 1.0, %v623
  %v625 = vtanh.pop %v613
  %627 = vrot.lane.b32.xlu0 %v618, 32
  %v628 = vpop.permute.xlu0 %627
  %v630 = vmul.f32 %v624, %v628
  %632 = vrot.lane.b32.xlu0 %v625, 32
  %v633 = vpop.permute.xlu0 %632
  %v635 = vmul.f32 %v624, %v633
  %637 = vrot.lane.b32.xlu0 %v635, 32
  %v638 = vpop.permute.xlu0 %637
  %v640 = vadd.f32 %v630, %v638
  %v641 = vtanh.pop %v640
  %643 = vrot.lane.b32.xlu0 %v641, 32
  %v644 = vpop.permute.xlu0 %643
  %v646 = vmul.f32 %v624, %v644
  %648 = vrot.lane.b32.xlu0 %v646, 64
  %v649 = vpop.permute.xlu0 %648
  %651 = vst.msk [vmem:[%s145] sm:$0xff] %vm61, %v649
  %653 = vrot.lane.b32.xlu0 %v640, 96
  %v654 = vpop.permute.xlu0 %653
  %656 = vst.msk [vmem:[%s227] sm:$0xff] %vm61, %v654
  %v657 = vstv %s480
  %vm658 = vcmp.eq.s32.totalorder %v35, %v657
  %v659 = vsel %vm658, 1, 0
  %660 = vset.pattern.permute.xlu0 0
  %661 = vperm.xlu0 %660, %v659
  %v662 = vpop.permute.xlu0 %661
  %vm663 = vcmp.eq.s32.totalorder %v662, 1
  %v664 = vld [vmem:[%s5] sm:$0xff]
  %666 = vrot.lane.b32.xlu0 %v664, 64
  %v667 = vpop.permute.xlu0 %666
  %v669 = vsel %vm663, %v646, %v667
  %671 = vrot.lane.b32.xlu0 %v669, 64
  %v672 = vpop.permute.xlu0 %671
  %674 = vst.msk [vmem:[%s5] sm:$0xff] %vm61, %v672
  %s675 = sadd.s32 %s45, 3
  %s676 = scalar_lea.vmem %s0, 24
  %v677 = vld [vmem:[%s676] sm:$0xff]
  %v678 = vld [vmem:[#allocation2] sm:$0xff]
  %v679 = vpack.c.bf16 %v678, %v678
  %v681 = vsel %vm61, %v679, 0
  %683 = vmatprep.subr.bf16.mxu0 0
  %684 = vmatpush1.bf16.msra.mxu0 %v57
  %685 = vmatprep.subr.bf16.mxu0 0
  %686 = vmatpush1.bf16.msra.mxu0 %v58
  %687 = vmatprep.subr.bf16.mxu0 0
  %688 = vmatpush1.bf16.msra.mxu0 0
  %689 = vmatprep.subr.bf16.mxu0 0
  %690 = vmatpush1.bf16.msra.mxu0 0
  %691 = vmatprep.subr.bf16.mxu0 0
  %692 = vmatpush1.bf16.msra.mxu0 0
  %693 = vmatprep.subr.bf16.mxu0 0
  %694 = vmatpush1.bf16.msra.mxu0 0
  %695 = vmatprep.subr.bf16.mxu0 0
  %696 = vmatpush1.bf16.msra.mxu0 0
  %697 = vmatprep.subr.bf16.mxu0 0
  %698 = vmatpush1.bf16.msra.mxu0 0
  %699 = vmatprep.subr.bf16.mxu0 0
  %700 = vmatpush1.bf16.msra.mxu0 0
  %701 = vmatprep.subr.bf16.mxu0 0
  %702 = vmatpush1.bf16.msra.mxu0 0
  %703 = vmatprep.subr.bf16.mxu0 0
  %704 = vmatpush1.bf16.msra.mxu0 0
  %705 = vmatprep.subr.bf16.mxu0 0
  %706 = vmatpush1.bf16.msra.mxu0 0
  %707 = vmatprep.subr.bf16.mxu0 0
  %708 = vmatpush1.bf16.msra.mxu0 0
  %709 = vmatprep.subr.bf16.mxu0 0
  %710 = vmatpush1.bf16.msra.mxu0 0
  %711 = vmatprep.subr.bf16.mxu0 0
  %712 = vmatpush1.bf16.msra.mxu0 0
  %713 = vmatprep.subr.bf16.mxu0 0
  %714 = vmatpush1.bf16.msra.mxu0 0
  %715 = vmatprep.mubr.bf16.mxu0 0
  %716 = vmatmul.mubr.bf16.gmra.mrb[0].mxu0 %v681
  %v717 = vpop.f32.mrb[0].mxu0
  %v718 = vadd.f32 0.0, %v717
  %v719 = vpop.f32.mrb[0].mxu0
  %v720 = vpop.f32.mrb[0].mxu0
  %v721 = vpop.f32.mrb[0].mxu0
  %722 = vdwg.mxu0
  %v723 = vadd.f32 %v677, %v718
  %v724 = vld [vmem:[#allocation3] sm:$0xff]
  %v725 = vxor.u32 %v723, 2147483648
  %v726 = vmul.f32 %v725, 1.442695
  %v727 = vpow.pop %v726
  %v728 = vadd.f32 %v727, 1.0
  %v729 = vrcp.pop %v728
  %v730 = vmul.f32 1.0, %v729
  %v731 = vtanh.pop %v723
  %733 = vrot.lane.b32.xlu0 %v724, 32
  %v734 = vpop.permute.xlu0 %733
  %v736 = vmul.f32 %v730, %v734
  %738 = vrot.lane.b32.xlu0 %v731, 32
  %v739 = vpop.permute.xlu0 %738
  %v741 = vmul.f32 %v730, %v739
  %743 = vrot.lane.b32.xlu0 %v741, 32
  %v744 = vpop.permute.xlu0 %743
  %v746 = vadd.f32 %v736, %v744
  %v747 = vtanh.pop %v746
  %749 = vrot.lane.b32.xlu0 %v747, 32
  %v750 = vpop.permute.xlu0 %749
  %v752 = vmul.f32 %v730, %v750
  %754 = vrot.lane.b32.xlu0 %v752, 64
  %v755 = vpop.permute.xlu0 %754
  %757 = vst.msk [vmem:[#allocation2] sm:$0xff] %vm61, %v755
  %759 = vrot.lane.b32.xlu0 %v746, 96
  %v760 = vpop.permute.xlu0 %759
  %762 = vst.msk [vmem:[#allocation3] sm:$0xff] %vm61, %v760
  %v763 = vld [vmem:[%s145] sm:$0xff]
  %765 = vrot.lane.b32.xlu0 %v763, 32
  %v766 = vpop.permute.xlu0 %765
  %v768 = vsel %vm61, %v755, %v766
  %v769 = vpack.c.bf16 %v768, %v768
  %v771 = vsel %vm183, %v769, 0
  %773 = vmatprep.subr.bf16.mxu0 0
  %774 = vmatpush1.bf16.msra.mxu0 %v175
  %775 = vmatprep.subr.bf16.mxu0 0
  %776 = vmatpush1.bf16.msra.mxu0 %v176
  %777 = vmatprep.subr.bf16.mxu0 0
  %778 = vmatpush1.bf16.msra.mxu0 %v177
  %779 = vmatprep.subr.bf16.mxu0 0
  %780 = vmatpush1.bf16.msra.mxu0 %v178
  %781 = vmatprep.subr.bf16.mxu0 0
  %782 = vmatpush1.bf16.msra.mxu0 0
  %783 = vmatprep.subr.bf16.mxu0 0
  %784 = vmatpush1.bf16.msra.mxu0 0
  %785 = vmatprep.subr.bf16.mxu0 0
  %786 = vmatpush1.bf16.msra.mxu0 0
  %787 = vmatprep.subr.bf16.mxu0 0
  %788 = vmatpush1.bf16.msra.mxu0 0
  %789 = vmatprep.subr.bf16.mxu0 0
  %790 = vmatpush1.bf16.msra.mxu0 0
  %791 = vmatprep.subr.bf16.mxu0 0
  %792 = vmatpush1.bf16.msra.mxu0 0
  %793 = vmatprep.subr.bf16.mxu0 0
  %794 = vmatpush1.bf16.msra.mxu0 0
  %795 = vmatprep.subr.bf16.mxu0 0
  %796 = vmatpush1.bf16.msra.mxu0 0
  %797 = vmatprep.subr.bf16.mxu0 0
  %798 = vmatpush1.bf16.msra.mxu0 0
  %799 = vmatprep.subr.bf16.mxu0 0
  %800 = vmatpush1.bf16.msra.mxu0 0
  %801 = vmatprep.subr.bf16.mxu0 0
  %802 = vmatpush1.bf16.msra.mxu0 0
  %803 = vmatprep.subr.bf16.mxu0 0
  %804 = vmatpush1.bf16.msra.mxu0 0
  %805 = vmatprep.mubr.bf16.mxu0 0
  %806 = vmatmul.mubr.bf16.gmra.mrb[0].mxu0 %v771
  %v807 = vpop.f32.mrb[0].mxu0
  %v808 = vadd.f32 %v157, %v807
  %v809 = vpop.f32.mrb[0].mxu0
  %v810 = vpop.f32.mrb[0].mxu0
  %v811 = vpop.f32.mrb[0].mxu0
  %812 = vdwg.mxu0
  %v813 = vld [vmem:[%s227] sm:$0xff]
  %v814 = vxor.u32 %v808, 2147483648
  %v815 = vmul.f32 %v814, 1.442695
  %v816 = vpow.pop %v815
  %v817 = vadd.f32 %v816, 1.0
  %v818 = vrcp.pop %v817
  %v819 = vmul.f32 1.0, %v818
  %v820 = vtanh.pop %v808
  %822 = vrot.lane.b32.xlu0 %v813, 32
  %v823 = vpop.permute.xlu0 %822
  %v825 = vmul.f32 %v819, %v823
  %827 = vrot.lane.b32.xlu0 %v820, 32
  %v828 = vpop.permute.xlu0 %827
  %v830 = vmul.f32 %v819, %v828
  %832 = vrot.lane.b32.xlu0 %v830, 32
  %v833 = vpop.permute.xlu0 %832
  %v835 = vadd.f32 %v825, %v833
  %v836 = vtanh.pop %v835
  %838 = vrot.lane.b32.xlu0 %v836, 32
  %v839 = vpop.permute.xlu0 %838
  %v841 = vmul.f32 %v819, %v839
  %843 = vrot.lane.b32.xlu0 %v841, 64
  %v844 = vpop.permute.xlu0 %843
  %846 = vst.msk [vmem:[%s145] sm:$0xff] %vm61, %v844
  %848 = vrot.lane.b32.xlu0 %v835, 96
  %v849 = vpop.permute.xlu0 %848
  %851 = vst.msk [vmem:[%s227] sm:$0xff] %vm61, %v849
  %v852 = vstv %s675
  %vm853 = vcmp.eq.s32.totalorder %v35, %v852
  %v854 = vsel %vm853, 1, 0
  %855 = vset.pattern.permute.xlu0 0
  %856 = vperm.xlu0 %855, %v854
  %v857 = vpop.permute.xlu0 %856
  %vm858 = vcmp.eq.s32.totalorder %v857, 1
  %v859 = vld [vmem:[%s5] sm:$0xff]
  %861 = vrot.lane.b32.xlu0 %v859, 64
  %v862 = vpop.permute.xlu0 %861
  %v864 = vsel %vm858, %v841, %v862
  %866 = vrot.lane.b32.xlu0 %v864, 64
  %v867 = vpop.permute.xlu0 %866
  %869 = vst.msk [vmem:[%s5] sm:$0xff] %vm61, %v867
  %s870 = sadd.s32 %s45, 4
  %s871 = scalar_lea.vmem %s0, 32
  %v872 = vld [vmem:[%s871] sm:$0xff]
  %v873 = vld [vmem:[#allocation2] sm:$0xff]
  %v874 = vpack.c.bf16 %v873, %v873
  %v876 = vsel %vm61, %v874, 0
  %878 = vmatprep.subr.bf16.mxu0 0
  %879 = vmatpush1.bf16.msra.mxu0 %v57
  %880 = vmatprep.subr.bf16.mxu0 0
  %881 = vmatpush1.bf16.msra.mxu0 %v58
  %882 = vmatprep.subr.bf16.mxu0 0
  %883 = vmatpush1.bf16.msra.mxu0 0
  %884 = vmatprep.subr.bf16.mxu0 0
  %885 = vmatpush1.bf16.msra.mxu0 0
  %886 = vmatprep.subr.bf16.mxu0 0
  %887 = vmatpush1.bf16.msra.mxu0 0
  %888 = vmatprep.subr.bf16.mxu0 0
  %889 = vmatpush1.bf16.msra.mxu0 0
  %890 = vmatprep.subr.bf16.mxu0 0
  %891 = vmatpush1.bf16.msra.mxu0 0
  %892 = vmatprep.subr.bf16.mxu0 0
  %893 = vmatpush1.bf16.msra.mxu0 0
  %894 = vmatprep.subr.bf16.mxu0 0
  %895 = vmatpush1.bf16.msra.mxu0 0
  %896 = vmatprep.subr.bf16.mxu0 0
  %897 = vmatpush1.bf16.msra.mxu0 0
  %898 = vmatprep.subr.bf16.mxu0 0
  %899 = vmatpush1.bf16.msra.mxu0 0
  %900 = vmatprep.subr.bf16.mxu0 0
  %901 = vmatpush1.bf16.msra.mxu0 0
  %902 = vmatprep.subr.bf16.mxu0 0
  %903 = vmatpush1.bf16.msra.mxu0 0
  %904 = vmatprep.subr.bf16.mxu0 0
  %905 = vmatpush1.bf16.msra.mxu0 0
  %906 = vmatprep.subr.bf16.mxu0 0
  %907 = vmatpush1.bf16.msra.mxu0 0
  %908 = vmatprep.subr.bf16.mxu0 0
  %909 = vmatpush1.bf16.msra.mxu0 0
  %910 = vmatprep.mubr.bf16.mxu0 0
  %911 = vmatmul.mubr.bf16.gmra.mrb[0].mxu0 %v876
  %v912 = vpop.f32.mrb[0].mxu0
  %v913 = vadd.f32 0.0, %v912
  %v914 = vpop.f32.mrb[0].mxu0
  %v915 = vpop.f32.mrb[0].mxu0
  %v916 = vpop.f32.mrb[0].mxu0
  %917 = vdwg.mxu0
  %v918 = vadd.f32 %v872, %v913
  %v919 = vld [vmem:[#allocation3] sm:$0xff]
  %v920 = vxor.u32 %v918, 2147483648
  %v921 = vmul.f32 %v920, 1.442695
  %v922 = vpow.pop %v921
  %v923 = vadd.f32 %v922, 1.0
  %v924 = vrcp.pop %v923
  %v925 = vmul.f32 1.0, %v924
  %v926 = vtanh.pop %v918
  %928 = vrot.lane.b32.xlu0 %v919, 32
  %v929 = vpop.permute.xlu0 %928
  %v931 = vmul.f32 %v925, %v929
  %933 = vrot.lane.b32.xlu0 %v926, 32
  %v934 = vpop.permute.xlu0 %933
  %v936 = vmul.f32 %v925, %v934
  %938 = vrot.lane.b32.xlu0 %v936, 32
  %v939 = vpop.permute.xlu0 %938
  %v941 = vadd.f32 %v931, %v939
  %v942 = vtanh.pop %v941
  %944 = vrot.lane.b32.xlu0 %v942, 32
  %v945 = vpop.permute.xlu0 %944
  %v947 = vmul.f32 %v925, %v945
  %949 = vrot.lane.b32.xlu0 %v947, 64
  %v950 = vpop.permute.xlu0 %949
  %952 = vst.msk [vmem:[#allocation2] sm:$0xff] %vm61, %v950
  %954 = vrot.lane.b32.xlu0 %v941, 96
  %v955 = vpop.permute.xlu0 %954
  %957 = vst.msk [vmem:[#allocation3] sm:$0xff] %vm61, %v955
  %v958 = vld [vmem:[%s145] sm:$0xff]
  %960 = vrot.lane.b32.xlu0 %v958, 32
  %v961 = vpop.permute.xlu0 %960
  %v963 = vsel %vm61, %v950, %v961
  %v964 = vpack.c.bf16 %v963, %v963
  %v966 = vsel %vm183, %v964, 0
  %968 = vmatprep.subr.bf16.mxu0 0
  %969 = vmatpush1.bf16.msra.mxu0 %v175
  %970 = vmatprep.subr.bf16.mxu0 0
  %971 = vmatpush1.bf16.msra.mxu0 %v176
  %972 = vmatprep.subr.bf16.mxu0 0
  %973 = vmatpush1.bf16.msra.mxu0 %v177
  %974 = vmatprep.subr.bf16.mxu0 0
  %975 = vmatpush1.bf16.msra.mxu0 %v178
  %976 = vmatprep.subr.bf16.mxu0 0
  %977 = vmatpush1.bf16.msra.mxu0 0
  %978 = vmatprep.subr.bf16.mxu0 0
  %979 = vmatpush1.bf16.msra.mxu0 0
  %980 = vmatprep.subr.bf16.mxu0 0
  %981 = vmatpush1.bf16.msra.mxu0 0
  %982 = vmatprep.subr.bf16.mxu0 0
  %983 = vmatpush1.bf16.msra.mxu0 0
  %984 = vmatprep.subr.bf16.mxu0 0
  %985 = vmatpush1.bf16.msra.mxu0 0
  %986 = vmatprep.subr.bf16.mxu0 0
  %987 = vmatpush1.bf16.msra.mxu0 0
  %988 = vmatprep.subr.bf16.mxu0 0
  %989 = vmatpush1.bf16.msra.mxu0 0
  %990 = vmatprep.subr.bf16.mxu0 0
  %991 = vmatpush1.bf16.msra.mxu0 0
  %992 = vmatprep.subr.bf16.mxu0 0
  %993 = vmatpush1.bf16.msra.mxu0 0
  %994 = vmatprep.subr.bf16.mxu0 0
  %995 = vmatpush1.bf16.msra.mxu0 0
  %996 = vmatprep.subr.bf16.mxu0 0
  %997 = vmatpush1.bf16.msra.mxu0 0
  %998 = vmatprep.subr.bf16.mxu0 0
  %999 = vmatpush1.bf16.msra.mxu0 0
  %1000 = vmatprep.mubr.bf16.mxu0 0
  %1001 = vmatmul.mubr.bf16.gmra.mrb[0].mxu0 %v966
  %v1002 = vpop.f32.mrb[0].mxu0
  %v1003 = vadd.f32 %v157, %v1002
  %v1004 = vpop.f32.mrb[0].mxu0
  %v1005 = vpop.f32.mrb[0].mxu0
  %v1006 = vpop.f32.mrb[0].mxu0
  %1007 = vdwg.mxu0
  %v1008 = vld [vmem:[%s227] sm:$0xff]
  %v1009 = vxor.u32 %v1003, 2147483648
  %v1010 = vmul.f32 %v1009, 1.442695
  %v1011 = vpow.pop %v1010
  %v1012 = vadd.f32 %v1011, 1.0
  %v1013 = vrcp.pop %v1012
  %v1014 = vmul.f32 1.0, %v1013
  %v1015 = vtanh.pop %v1003
  %1017 = vrot.lane.b32.xlu0 %v1008, 32
  %v1018 = vpop.permute.xlu0 %1017
  %v1020 = vmul.f32 %v1014, %v1018
  %1022 = vrot.lane.b32.xlu0 %v1015, 32
  %v1023 = vpop.permute.xlu0 %1022
  %v1025 = vmul.f32 %v1014, %v1023
  %1027 = vrot.lane.b32.xlu0 %v1025, 32
  %v1028 = vpop.permute.xlu0 %1027
  %v1030 = vadd.f32 %v1020, %v1028
  %v1031 = vtanh.pop %v1030
  %1033 = vrot.lane.b32.xlu0 %v1031, 32
  %v1034 = vpop.permute.xlu0 %1033
  %v1036 = vmul.f32 %v1014, %v1034
  %1038 = vrot.lane.b32.xlu0 %v1036, 64
  %v1039 = vpop.permute.xlu0 %1038
  %1041 = vst.msk [vmem:[%s145] sm:$0xff] %vm61, %v1039
  %1043 = vrot.lane.b32.xlu0 %v1030, 96
  %v1044 = vpop.permute.xlu0 %1043
  %1046 = vst.msk [vmem:[%s227] sm:$0xff] %vm61, %v1044
  %v1047 = vstv %s870
  %vm1048 = vcmp.eq.s32.totalorder %v35, %v1047
  %v1049 = vsel %vm1048, 1, 0
  %1050 = vset.pattern.permute.xlu0 0
  %1051 = vperm.xlu0 %1050, %v1049
  %v1052 = vpop.permute.xlu0 %1051
  %vm1053 = vcmp.eq.s32.totalorder %v1052, 1
  %v1054 = vld [vmem:[%s5] sm:$0xff]
  %1056 = vrot.lane.b32.xlu0 %v1054, 64
  %v1057 = vpop.permute.xlu0 %1056
  %v1059 = vsel %vm1053, %v1036, %v1057
  %1061 = vrot.lane.b32.xlu0 %v1059, 64
  %v1062 = vpop.permute.xlu0 %1061
  %1064 = vst.msk [vmem:[%s5] sm:$0xff] %vm61, %v1062
  %s1065 = sadd.s32 %s45, 5
  %s1066 = scalar_lea.vmem %s0, 40
  %v1067 = vld [vmem:[%s1066] sm:$0xff]
  %v1068 = vld [vmem:[#allocation2] sm:$0xff]
  %v1069 = vpack.c.bf16 %v1068, %v1068
  %v1071 = vsel %vm61, %v1069, 0
  %1073 = vmatprep.subr.bf16.mxu0 0
  %1074 = vmatpush1.bf16.msra.mxu0 %v57
  %1075 = vmatprep.subr.bf16.mxu0 0
  %1076 = vmatpush1.bf16.msra.mxu0 %v58
  %1077 = vmatprep.subr.bf16.mxu0 0
  %1078 = vmatpush1.bf16.msra.mxu0 0
  %1079 = vmatprep.subr.bf16.mxu0 0
  %1080 = vmatpush1.bf16.msra.mxu0 0
  %1081 = vmatprep.subr.bf16.mxu0 0
  %1082 = vmatpush1.bf16.msra.mxu0 0
  %1083 = vmatprep.subr.bf16.mxu0 0
  %1084 = vmatpush1.bf16.msra.mxu0 0
  %1085 = vmatprep.subr.bf16.mxu0 0
  %1086 = vmatpush1.bf16.msra.mxu0 0
  %1087 = vmatprep.subr.bf16.mxu0 0
  %1088 = vmatpush1.bf16.msra.mxu0 0
  %1089 = vmatprep.subr.bf16.mxu0 0
  %1090 = vmatpush1.bf16.msra.mxu0 0
  %1091 = vmatprep.subr.bf16.mxu0 0
  %1092 = vmatpush1.bf16.msra.mxu0 0
  %1093 = vmatprep.subr.bf16.mxu0 0
  %1094 = vmatpush1.bf16.msra.mxu0 0
  %1095 = vmatprep.subr.bf16.mxu0 0
  %1096 = vmatpush1.bf16.msra.mxu0 0
  %1097 = vmatprep.subr.bf16.mxu0 0
  %1098 = vmatpush1.bf16.msra.mxu0 0
  %1099 = vmatprep.subr.bf16.mxu0 0
  %1100 = vmatpush1.bf16.msra.mxu0 0
  %1101 = vmatprep.subr.bf16.mxu0 0
  %1102 = vmatpush1.bf16.msra.mxu0 0
  %1103 = vmatprep.subr.bf16.mxu0 0
  %1104 = vmatpush1.bf16.msra.mxu0 0
  %1105 = vmatprep.mubr.bf16.mxu0 0
  %1106 = vmatmul.mubr.bf16.gmra.mrb[0].mxu0 %v1071
  %v1107 = vpop.f32.mrb[0].mxu0
  %v1108 = vadd.f32 0.0, %v1107
  %v1109 = vpop.f32.mrb[0].mxu0
  %v1110 = vpop.f32.mrb[0].mxu0
  %v1111 = vpop.f32.mrb[0].mxu0
  %1112 = vdwg.mxu0
  %v1113 = vadd.f32 %v1067, %v1108
  %v1114 = vld [vmem:[#allocation3] sm:$0xff]
  %v1115 = vxor.u32 %v1113, 2147483648
  %v1116 = vmul.f32 %v1115, 1.442695
  %v1117 = vpow.pop %v1116
  %v1118 = vadd.f32 %v1117, 1.0
  %v1119 = vrcp.pop %v1118
  %v1120 = vmul.f32 1.0, %v1119
  %v1121 = vtanh.pop %v1113
  %1123 = vrot.lane.b32.xlu0 %v1114, 32
  %v1124 = vpop.permute.xlu0 %1123
  %v1126 = vmul.f32 %v1120, %v1124
  %1128 = vrot.lane.b32.xlu0 %v1121, 32
  %v1129 = vpop.permute.xlu0 %1128
  %v1131 = vmul.f32 %v1120, %v1129
  %1133 = vrot.lane.b32.xlu0 %v1131, 32
  %v1134 = vpop.permute.xlu0 %1133
  %v1136 = vadd.f32 %v1126, %v1134
  %v1137 = vtanh.pop %v1136
  %1139 = vrot.lane.b32.xlu0 %v1137, 32
  %v1140 = vpop.permute.xlu0 %1139
  %v1142 = vmul.f32 %v1120, %v1140
  %1144 = vrot.lane.b32.xlu0 %v1142, 64
  %v1145 = vpop.permute.xlu0 %1144
  %1147 = vst.msk [vmem:[#allocation2] sm:$0xff] %vm61, %v1145
  %1149 = vrot.lane.b32.xlu0 %v1136, 96
  %v1150 = vpop.permute.xlu0 %1149
  %1152 = vst.msk [vmem:[#allocation3] sm:$0xff] %vm61, %v1150
  %v1153 = vld [vmem:[%s145] sm:$0xff]
  %1155 = vrot.lane.b32.xlu0 %v1153, 32
  %v1156 = vpop.permute.xlu0 %1155
  %v1158 = vsel %vm61, %v1145, %v1156
  %v1159 = vpack.c.bf16 %v1158, %v1158
  %v1161 = vsel %vm183, %v1159, 0
  %1163 = vmatprep.subr.bf16.mxu0 0
  %1164 = vmatpush1.bf16.msra.mxu0 %v175
  %1165 = vmatprep.subr.bf16.mxu0 0
  %1166 = vmatpush1.bf16.msra.mxu0 %v176
  %1167 = vmatprep.subr.bf16.mxu0 0
  %1168 = vmatpush1.bf16.msra.mxu0 %v177
  %1169 = vmatprep.subr.bf16.mxu0 0
  %1170 = vmatpush1.bf16.msra.mxu0 %v178
  %1171 = vmatprep.subr.bf16.mxu0 0
  %1172 = vmatpush1.bf16.msra.mxu0 0
  %1173 = vmatprep.subr.bf16.mxu0 0
  %1174 = vmatpush1.bf16.msra.mxu0 0
  %1175 = vmatprep.subr.bf16.mxu0 0
  %1176 = vmatpush1.bf16.msra.mxu0 0
  %1177 = vmatprep.subr.bf16.mxu0 0
  %1178 = vmatpush1.bf16.msra.mxu0 0
  %1179 = vmatprep.subr.bf16.mxu0 0
  %1180 = vmatpush1.bf16.msra.mxu0 0
  %1181 = vmatprep.subr.bf16.mxu0 0
  %1182 = vmatpush1.bf16.msra.mxu0 0
  %1183 = vmatprep.subr.bf16.mxu0 0
  %1184 = vmatpush1.bf16.msra.mxu0 0
  %1185 = vmatprep.subr.bf16.mxu0 0
  %1186 = vmatpush1.bf16.msra.mxu0 0
  %1187 = vmatprep.subr.bf16.mxu0 0
  %1188 = vmatpush1.bf16.msra.mxu0 0
  %1189 = vmatprep.subr.bf16.mxu0 0
  %1190 = vmatpush1.bf16.msra.mxu0 0
  %1191 = vmatprep.subr.bf16.mxu0 0
  %1192 = vmatpush1.bf16.msra.mxu0 0
  %1193 = vmatprep.subr.bf16.mxu0 0
  %1194 = vmatpush1.bf16.msra.mxu0 0
  %1195 = vmatprep.mubr.bf16.mxu0 0
  %1196 = vmatmul.mubr.bf16.gmra.mrb[0].mxu0 %v1161
  %v1197 = vpop.f32.mrb[0].mxu0
  %v1198 = vadd.f32 %v157, %v1197
  %v1199 = vpop.f32.mrb[0].mxu0
  %v1200 = vpop.f32.mrb[0].mxu0
  %v1201 = vpop.f32.mrb[0].mxu0
  %1202 = vdwg.mxu0
  %v1203 = vld [vmem:[%s227] sm:$0xff]
  %v1204 = vxor.u32 %v1198, 2147483648
  %v1205 = vmul.f32 %v1204, 1.442695
  %v1206 = vpow.pop %v1205
  %v1207 = vadd.f32 %v1206, 1.0
  %v1208 = vrcp.pop %v1207
  %v1209 = vmul.f32 1.0, %v1208
  %v1210 = vtanh.pop %v1198
  %1212 = vrot.lane.b32.xlu0 %v1203, 32
  %v1213 = vpop.permute.xlu0 %1212
  %v1215 = vmul.f32 %v1209, %v1213
  %1217 = vrot.lane.b32.xlu0 %v1210, 32
  %v1218 = vpop.permute.xlu0 %1217
  %v1220 = vmul.f32 %v1209, %v1218
  %1222 = vrot.lane.b32.xlu0 %v1220, 32
  %v1223 = vpop.permute.xlu0 %1222
  %v1225 = vadd.f32 %v1215, %v1223
  %v1226 = vtanh.pop %v1225
  %1228 = vrot.lane.b32.xlu0 %v1226, 32
  %v1229 = vpop.permute.xlu0 %1228
  %v1231 = vmul.f32 %v1209, %v1229
  %1233 = vrot.lane.b32.xlu0 %v1231, 64
  %v1234 = vpop.permute.xlu0 %1233
  %1236 = vst.msk [vmem:[%s145] sm:$0xff] %vm61, %v1234
  %1238 = vrot.lane.b32.xlu0 %v1225, 96
  %v1239 = vpop.permute.xlu0 %1238
  %1241 = vst.msk [vmem:[%s227] sm:$0xff] %vm61, %v1239
  %v1242 = vstv %s1065
  %vm1243 = vcmp.eq.s32.totalorder %v35, %v1242
  %v1244 = vsel %vm1243, 1, 0
  %1245 = vset.pattern.permute.xlu0 0
  %1246 = vperm.xlu0 %1245, %v1244
  %v1247 = vpop.permute.xlu0 %1246
  %vm1248 = vcmp.eq.s32.totalorder %v1247, 1
  %v1249 = vld [vmem:[%s5] sm:$0xff]
  %1251 = vrot.lane.b32.xlu0 %v1249, 64
  %v1252 = vpop.permute.xlu0 %1251
  %v1254 = vsel %vm1248, %v1231, %v1252
  %1256 = vrot.lane.b32.xlu0 %v1254, 64
  %v1257 = vpop.permute.xlu0 %1256
  %1259 = vst.msk [vmem:[%s5] sm:$0xff] %vm61, %v1257
  %s1260 = sadd.s32 %s45, 6
  %s1261 = scalar_lea.vmem %s0, 48
  %v1262 = vld [vmem:[%s1261] sm:$0xff]
  %v1263 = vld [vmem:[#allocation2] sm:$0xff]
  %v1264 = vpack.c.bf16 %v1263, %v1263
  %v1266 = vsel %vm61, %v1264, 0
  %1268 = vmatprep.subr.bf16.mxu0 0
  %1269 = vmatpush1.bf16.msra.mxu0 %v57
  %1270 = vmatprep.subr.bf16.mxu0 0
  %1271 = vmatpush1.bf16.msra.mxu0 %v58
  %1272 = vmatprep.subr.bf16.mxu0 0
  %1273 = vmatpush1.bf16.msra.mxu0 0
  %1274 = vmatprep.subr.bf16.mxu0 0
  %1275 = vmatpush1.bf16.msra.mxu0 0
  %1276 = vmatprep.subr.bf16.mxu0 0
  %1277 = vmatpush1.bf16.msra.mxu0 0
  %1278 = vmatprep.subr.bf16.mxu0 0
  %1279 = vmatpush1.bf16.msra.mxu0 0
  %1280 = vmatprep.subr.bf16.mxu0 0
  %1281 = vmatpush1.bf16.msra.mxu0 0
  %1282 = vmatprep.subr.bf16.mxu0 0
  %1283 = vmatpush1.bf16.msra.mxu0 0
  %1284 = vmatprep.subr.bf16.mxu0 0
  %1285 = vmatpush1.bf16.msra.mxu0 0
  %1286 = vmatprep.subr.bf16.mxu0 0
  %1287 = vmatpush1.bf16.msra.mxu0 0
  %1288 = vmatprep.subr.bf16.mxu0 0
  %1289 = vmatpush1.bf16.msra.mxu0 0
  %1290 = vmatprep.subr.bf16.mxu0 0
  %1291 = vmatpush1.bf16.msra.mxu0 0
  %1292 = vmatprep.subr.bf16.mxu0 0
  %1293 = vmatpush1.bf16.msra.mxu0 0
  %1294 = vmatprep.subr.bf16.mxu0 0
  %1295 = vmatpush1.bf16.msra.mxu0 0
  %1296 = vmatprep.subr.bf16.mxu0 0
  %1297 = vmatpush1.bf16.msra.mxu0 0
  %1298 = vmatprep.subr.bf16.mxu0 0
  %1299 = vmatpush1.bf16.msra.mxu0 0
  %1300 = vmatprep.mubr.bf16.mxu0 0
  %1301 = vmatmul.mubr.bf16.gmra.mrb[0].mxu0 %v1266
  %v1302 = vpop.f32.mrb[0].mxu0
  %v1303 = vadd.f32 0.0, %v1302
  %v1304 = vpop.f32.mrb[0].mxu0
  %v1305 = vpop.f32.mrb[0].mxu0
  %v1306 = vpop.f32.mrb[0].mxu0
  %1307 = vdwg.mxu0
  %v1308 = vadd.f32 %v1262, %v1303
  %v1309 = vld [vmem:[#allocation3] sm:$0xff]
  %v1310 = vxor.u32 %v1308, 2147483648
  %v1311 = vmul.f32 %v1310, 1.442695
  %v1312 = vpow.pop %v1311
  %v1313 = vadd.f32 %v1312, 1.0
  %v1314 = vrcp.pop %v1313
  %v1315 = vmul.f32 1.0, %v1314
  %v1316 = vtanh.pop %v1308
  %1318 = vrot.lane.b32.xlu0 %v1309, 32
  %v1319 = vpop.permute.xlu0 %1318
  %v1321 = vmul.f32 %v1315, %v1319
  %1323 = vrot.lane.b32.xlu0 %v1316, 32
  %v1324 = vpop.permute.xlu0 %1323
  %v1326 = vmul.f32 %v1315, %v1324
  %1328 = vrot.lane.b32.xlu0 %v1326, 32
  %v1329 = vpop.permute.xlu0 %1328
  %v1331 = vadd.f32 %v1321, %v1329
  %v1332 = vtanh.pop %v1331
  %1334 = vrot.lane.b32.xlu0 %v1332, 32
  %v1335 = vpop.permute.xlu0 %1334
  %v1337 = vmul.f32 %v1315, %v1335
  %1339 = vrot.lane.b32.xlu0 %v1337, 64
  %v1340 = vpop.permute.xlu0 %1339
  %1342 = vst.msk [vmem:[#allocation2] sm:$0xff] %vm61, %v1340
  %1344 = vrot.lane.b32.xlu0 %v1331, 96
  %v1345 = vpop.permute.xlu0 %1344
  %1347 = vst.msk [vmem:[#allocation3] sm:$0xff] %vm61, %v1345
  %v1348 = vld [vmem:[%s145] sm:$0xff]
  %1350 = vrot.lane.b32.xlu0 %v1348, 32
  %v1351 = vpop.permute.xlu0 %1350
  %v1353 = vsel %vm61, %v1340, %v1351
  %v1354 = vpack.c.bf16 %v1353, %v1353
  %v1356 = vsel %vm183, %v1354, 0
  %1358 = vmatprep.subr.bf16.mxu0 0
  %1359 = vmatpush1.bf16.msra.mxu0 %v175
  %1360 = vmatprep.subr.bf16.mxu0 0
  %1361 = vmatpush1.bf16.msra.mxu0 %v176
  %1362 = vmatprep.subr.bf16.mxu0 0
  %1363 = vmatpush1.bf16.msra.mxu0 %v177
  %1364 = vmatprep.subr.bf16.mxu0 0
  %1365 = vmatpush1.bf16.msra.mxu0 %v178
  %1366 = vmatprep.subr.bf16.mxu0 0
  %1367 = vmatpush1.bf16.msra.mxu0 0
  %1368 = vmatprep.subr.bf16.mxu0 0
  %1369 = vmatpush1.bf16.msra.mxu0 0
  %1370 = vmatprep.subr.bf16.mxu0 0
  %1371 = vmatpush1.bf16.msra.mxu0 0
  %1372 = vmatprep.subr.bf16.mxu0 0
  %1373 = vmatpush1.bf16.msra.mxu0 0
  %1374 = vmatprep.subr.bf16.mxu0 0
  %1375 = vmatpush1.bf16.msra.mxu0 0
  %1376 = vmatprep.subr.bf16.mxu0 0
  %1377 = vmatpush1.bf16.msra.mxu0 0
  %1378 = vmatprep.subr.bf16.mxu0 0
  %1379 = vmatpush1.bf16.msra.mxu0 0
  %1380 = vmatprep.subr.bf16.mxu0 0
  %1381 = vmatpush1.bf16.msra.mxu0 0
  %1382 = vmatprep.subr.bf16.mxu0 0
  %1383 = vmatpush1.bf16.msra.mxu0 0
  %1384 = vmatprep.subr.bf16.mxu0 0
  %1385 = vmatpush1.bf16.msra.mxu0 0
  %1386 = vmatprep.subr.bf16.mxu0 0
  %1387 = vmatpush1.bf16.msra.mxu0 0
  %1388 = vmatprep.subr.bf16.mxu0 0
  %1389 = vmatpush1.bf16.msra.mxu0 0
  %1390 = vmatprep.mubr.bf16.mxu0 0
  %1391 = vmatmul.mubr.bf16.gmra.mrb[0].mxu0 %v1356
  %v1392 = vpop.f32.mrb[0].mxu0
  %v1393 = vadd.f32 %v157, %v1392
  %v1394 = vpop.f32.mrb[0].mxu0
  %v1395 = vpop.f32.mrb[0].mxu0
  %v1396 = vpop.f32.mrb[0].mxu0
  %1397 = vdwg.mxu0
  %v1398 = vld [vmem:[%s227] sm:$0xff]
  %v1399 = vxor.u32 %v1393, 2147483648
  %v1400 = vmul.f32 %v1399, 1.442695
  %v1401 = vpow.pop %v1400
  %v1402 = vadd.f32 %v1401, 1.0
  %v1403 = vrcp.pop %v1402
  %v1404 = vmul.f32 1.0, %v1403
  %v1405 = vtanh.pop %v1393
  %1407 = vrot.lane.b32.xlu0 %v1398, 32
  %v1408 = vpop.permute.xlu0 %1407
  %v1410 = vmul.f32 %v1404, %v1408
  %1412 = vrot.lane.b32.xlu0 %v1405, 32
  %v1413 = vpop.permute.xlu0 %1412
  %v1415 = vmul.f32 %v1404, %v1413
  %1417 = vrot.lane.b32.xlu0 %v1415, 32
  %v1418 = vpop.permute.xlu0 %1417
  %v1420 = vadd.f32 %v1410, %v1418
  %v1421 = vtanh.pop %v1420
  %1423 = vrot.lane.b32.xlu0 %v1421, 32
  %v1424 = vpop.permute.xlu0 %1423
  %v1426 = vmul.f32 %v1404, %v1424
  %1428 = vrot.lane.b32.xlu0 %v1426, 64
  %v1429 = vpop.permute.xlu0 %1428
  %1431 = vst.msk [vmem:[%s145] sm:$0xff] %vm61, %v1429
  %1433 = vrot.lane.b32.xlu0 %v1420, 96
  %v1434 = vpop.permute.xlu0 %1433
  %1436 = vst.msk [vmem:[%s227] sm:$0xff] %vm61, %v1434
  %v1437 = vstv %s1260
  %vm1438 = vcmp.eq.s32.totalorder %v35, %v1437
  %v1439 = vsel %vm1438, 1, 0
  %1440 = vset.pattern.permute.xlu0 0
  %1441 = vperm.xlu0 %1440, %v1439
  %v1442 = vpop.permute.xlu0 %1441
  %vm1443 = vcmp.eq.s32.totalorder %v1442, 1
  %v1444 = vld [vmem:[%s5] sm:$0xff]
  %1446 = vrot.lane.b32.xlu0 %v1444, 64
  %v1447 = vpop.permute.xlu0 %1446
  %v1449 = vsel %vm1443, %v1426, %v1447
  %1451 = vrot.lane.b32.xlu0 %v1449, 64
  %v1452 = vpop.permute.xlu0 %1451
  %1454 = vst.msk [vmem:[%s5] sm:$0xff] %vm61, %v1452
  %s1455 = sadd.s32 %s45, 7
  %s1456 = scalar_lea.vmem %s0, 56
  %v1457 = vld [vmem:[%s1456] sm:$0xff]
  %v1458 = vld [vmem:[#allocation2] sm:$0xff]
  %v1459 = vpack.c.bf16 %v1458, %v1458
  %v1461 = vsel %vm61, %v1459, 0
  %1463 = vmatprep.subr.bf16.mxu0 0
  %1464 = vmatpush1.bf16.msra.mxu0 %v57
  %1465 = vmatprep.subr.bf16.mxu0 0
  %1466 = vmatpush1.bf16.msra.mxu0 %v58
  %1467 = vmatprep.subr.bf16.mxu0 0
  %1468 = vmatpush1.bf16.msra.mxu0 0
  %1469 = vmatprep.subr.bf16.mxu0 0
  %1470 = vmatpush1.bf16.msra.mxu0 0
  %1471 = vmatprep.subr.bf16.mxu0 0
  %1472 = vmatpush1.bf16.msra.mxu0 0
  %1473 = vmatprep.subr.bf16.mxu0 0
  %1474 = vmatpush1.bf16.msra.mxu0 0
  %1475 = vmatprep.subr.bf16.mxu0 0
  %1476 = vmatpush1.bf16.msra.mxu0 0
  %1477 = vmatprep.subr.bf16.mxu0 0
  %1478 = vmatpush1.bf16.msra.mxu0 0
  %1479 = vmatprep.subr.bf16.mxu0 0
  %1480 = vmatpush1.bf16.msra.mxu0 0
  %1481 = vmatprep.subr.bf16.mxu0 0
  %1482 = vmatpush1.bf16.msra.mxu0 0
  %1483 = vmatprep.subr.bf16.mxu0 0
  %1484 = vmatpush1.bf16.msra.mxu0 0
  %1485 = vmatprep.subr.bf16.mxu0 0
  %1486 = vmatpush1.bf16.msra.mxu0 0
  %1487 = vmatprep.subr.bf16.mxu0 0
  %1488 = vmatpush1.bf16.msra.mxu0 0
  %1489 = vmatprep.subr.bf16.mxu0 0
  %1490 = vmatpush1.bf16.msra.mxu0 0
  %1491 = vmatprep.subr.bf16.mxu0 0
  %1492 = vmatpush1.bf16.msra.mxu0 0
  %1493 = vmatprep.subr.bf16.mxu0 0
  %1494 = vmatpush1.bf16.msra.mxu0 0
  %1495 = vmatprep.mubr.bf16.mxu0 0
  %1496 = vmatmul.mubr.bf16.gmra.mrb[0].mxu0 %v1461
  %v1497 = vpop.f32.mrb[0].mxu0
  %v1498 = vadd.f32 0.0, %v1497
  %v1499 = vpop.f32.mrb[0].mxu0
  %v1500 = vpop.f32.mrb[0].mxu0
  %v1501 = vpop.f32.mrb[0].mxu0
  %1502 = vdwg.mxu0
  %v1503 = vadd.f32 %v1457, %v1498
  %v1504 = vld [vmem:[#allocation3] sm:$0xff]
  %v1505 = vxor.u32 %v1503, 2147483648
  %v1506 = vmul.f32 %v1505, 1.442695
  %v1507 = vpow.pop %v1506
  %v1508 = vadd.f32 %v1507, 1.0
  %v1509 = vrcp.pop %v1508
  %v1510 = vmul.f32 1.0, %v1509
  %v1511 = vtanh.pop %v1503
  %1513 = vrot.lane.b32.xlu0 %v1504, 32
  %v1514 = vpop.permute.xlu0 %1513
  %v1516 = vmul.f32 %v1510, %v1514
  %1518 = vrot.lane.b32.xlu0 %v1511, 32
  %v1519 = vpop.permute.xlu0 %1518
  %v1521 = vmul.f32 %v1510, %v1519
  %1523 = vrot.lane.b32.xlu0 %v1521, 32
  %v1524 = vpop.permute.xlu0 %1523
  %v1526 = vadd.f32 %v1516, %v1524
  %v1527 = vtanh.pop %v1526
  %1529 = vrot.lane.b32.xlu0 %v1527, 32
  %v1530 = vpop.permute.xlu0 %1529
  %v1532 = vmul.f32 %v1510, %v1530
  %1534 = vrot.lane.b32.xlu0 %v1532, 64
  %v1535 = vpop.permute.xlu0 %1534
  %1537 = vst.msk [vmem:[#allocation2] sm:$0xff] %vm61, %v1535
  %1539 = vrot.lane.b32.xlu0 %v1526, 96
  %v1540 = vpop.permute.xlu0 %1539
  %1542 = vst.msk [vmem:[#allocation3] sm:$0xff] %vm61, %v1540
  %v1543 = vld [vmem:[%s145] sm:$0xff]
  %1545 = vrot.lane.b32.xlu0 %v1543, 32
  %v1546 = vpop.permute.xlu0 %1545
  %v1548 = vsel %vm61, %v1535, %v1546
  %v1549 = vpack.c.bf16 %v1548, %v1548
  %v1551 = vsel %vm183, %v1549, 0
  %1553 = vmatprep.subr.bf16.mxu0 0
  %1554 = vmatpush1.bf16.msra.mxu0 %v175
  %1555 = vmatprep.subr.bf16.mxu0 0
  %1556 = vmatpush1.bf16.msra.mxu0 %v176
  %1557 = vmatprep.subr.bf16.mxu0 0
  %1558 = vmatpush1.bf16.msra.mxu0 %v177
  %1559 = vmatprep.subr.bf16.mxu0 0
  %1560 = vmatpush1.bf16.msra.mxu0 %v178
  %1561 = vmatprep.subr.bf16.mxu0 0
  %1562 = vmatpush1.bf16.msra.mxu0 0
  %1563 = vmatprep.subr.bf16.mxu0 0
  %1564 = vmatpush1.bf16.msra.mxu0 0
  %1565 = vmatprep.subr.bf16.mxu0 0
  %1566 = vmatpush1.bf16.msra.mxu0 0
  %1567 = vmatprep.subr.bf16.mxu0 0
  %1568 = vmatpush1.bf16.msra.mxu0 0
  %1569 = vmatprep.subr.bf16.mxu0 0
  %1570 = vmatpush1.bf16.msra.mxu0 0
  %1571 = vmatprep.subr.bf16.mxu0 0
  %1572 = vmatpush1.bf16.msra.mxu0 0
  %1573 = vmatprep.subr.bf16.mxu0 0
  %1574 = vmatpush1.bf16.msra.mxu0 0
  %1575 = vmatprep.subr.bf16.mxu0 0
  %1576 = vmatpush1.bf16.msra.mxu0 0
  %1577 = vmatprep.subr.bf16.mxu0 0
  %1578 = vmatpush1.bf16.msra.mxu0 0
  %1579 = vmatprep.subr.bf16.mxu0 0
  %1580 = vmatpush1.bf16.msra.mxu0 0
  %1581 = vmatprep.subr.bf16.mxu0 0
  %1582 = vmatpush1.bf16.msra.mxu0 0
  %1583 = vmatprep.subr.bf16.mxu0 0
  %1584 = vmatpush1.bf16.msra.mxu0 0
  %1585 = vmatprep.mubr.bf16.mxu0 0
  %1586 = vmatmul.mubr.bf16.gmra.mrb[0].mxu0 %v1551
  %v1587 = vpop.f32.mrb[0].mxu0
  %v1588 = vadd.f32 %v157, %v1587
  %v1589 = vpop.f32.mrb[0].mxu0
  %v1590 = vpop.f32.mrb[0].mxu0
  %v1591 = vpop.f32.mrb[0].mxu0
  %1592 = vdwg.mxu0
  %v1593 = vld [vmem:[%s227] sm:$0xff]
  %v1594 = vxor.u32 %v1588, 2147483648
  %v1595 = vmul.f32 %v1594, 1.442695
  %v1596 = vpow.pop %v1595
  %v1597 = vadd.f32 %v1596, 1.0
  %v1598 = vrcp.pop %v1597
  %v1599 = vmul.f32 1.0, %v1598
  %v1600 = vtanh.pop %v1588
  %1602 = vrot.lane.b32.xlu0 %v1593, 32
  %v1603 = vpop.permute.xlu0 %1602
  %v1605 = vmul.f32 %v1599, %v1603
  %1607 = vrot.lane.b32.xlu0 %v1600, 32
  %v1608 = vpop.permute.xlu0 %1607
  %v1610 = vmul.f32 %v1599, %v1608
  %1612 = vrot.lane.b32.xlu0 %v1610, 32
  %v1613 = vpop.permute.xlu0 %1612
  %v1615 = vadd.f32 %v1605, %v1613
  %v1616 = vtanh.pop %v1615
  %1618 = vrot.lane.b32.xlu0 %v1616, 32
  %v1619 = vpop.permute.xlu0 %1618
  %v1621 = vmul.f32 %v1599, %v1619
  %1623 = vrot.lane.b32.xlu0 %v1621, 64
  %v1624 = vpop.permute.xlu0 %1623
  %1626 = vst.msk [vmem:[%s145] sm:$0xff] %vm61, %v1624
  %1628 = vrot.lane.b32.xlu0 %v1615, 96
  %v1629 = vpop.permute.xlu0 %1628
  %1631 = vst.msk [vmem:[%s227] sm:$0xff] %vm61, %v1629
  %v1632 = vstv %s1455
  %vm1633 = vcmp.eq.s32.totalorder %v35, %v1632
  %v1634 = vsel %vm1633, 1, 0
  %1635 = vset.pattern.permute.xlu0 0
  %1636 = vperm.xlu0 %1635, %v1634
  %v1637 = vpop.permute.xlu0 %1636
  %vm1638 = vcmp.eq.s32.totalorder %v1637, 1
  %v1639 = vld [vmem:[%s5] sm:$0xff]
  %1641 = vrot.lane.b32.xlu0 %v1639, 64
  %v1642 = vpop.permute.xlu0 %1641
  %v1644 = vsel %vm1638, %v1621, %v1642
  %1646 = vrot.lane.b32.xlu0 %v1644, 64
  %v1647 = vpop.permute.xlu0 %1646
  %1649 = vst.msk [vmem:[%s5] sm:$0xff] %vm61, %v1647
  // Predicated region
  $region26: #{lstm_encoder_forward.1} parent=0 // pred_check
    _
  $region27: #{lstm_encoder_forward.1} parent=0 // pred_check_branch
    %1651 = sbr.rel (0) target = $region29
  $region28: #{lstm_encoder_forward.1} parent=0 // pred_region
    _
  $region29: #{lstm_encoder_forward.1} parent=0 // pred_fallthru
    _
  // Predicated region
  $region30: #{lstm_encoder_forward.1} parent=0 // pred_check
    _
  $region31: #{lstm_encoder_forward.1} parent=0 // pred_check_branch
    %1653 = sbr.rel (0) target = $region33
  $region32: #{lstm_encoder_forward.1} parent=0 // pred_region
    _
  $region33: #{lstm_encoder_forward.1} parent=0 // pred_fallthru
    _

</llo_original>
